<compile_context>
chip_gen: v5e
topology: v5e:2x2
jax: 0.10.0
libtpu: 0.0.40
codegen_flags: <defaults>
</compile_context>

<pallas_src>
import functools

import numpy as np
import jax
import jax.numpy as jnp
from jax.experimental import pallas as pl
from jax.experimental.pallas import tpu as pltpu


def _shotgun_mlp_kernel(pos_ref, xb1_ref, wpos_ref, wskip_ref, wo_ref, b_ref,
                        out_ref, *, hid, n_skip):
    """One grid step: residual MLP on TM pixels (lanes) of one batch element.

    pos_ref  : (n_pos, TM)          positional features (shared across batch)
    xb1_ref  : (1, 2*hid, 1)        W_cat[:, :nx] @ x[b] + [b_res; b_nl]
    wpos_ref : (2*hid, n_pos)       [res ; nonlin] block-1 weights, pos columns
    wskip_ref: (n_skip*hid, hid)    skip-block nonlin weights, stacked
    wo_ref   : (C, hid)             output Linear weight
    b_ref    : (n_skip*hid + C, 1)  remaining biases, packed
    out_ref  : (1, C, TM)           lane-dense output tile
    """
    # Block 1: res(X) + tanh(nonlin(X)).  The x-dependent part of both Linears
    # is the per-batch bias xb1; only positional features are streamed.
    z = jnp.dot(wpos_ref[...], pos_ref[...],
                preferred_element_type=jnp.float32) + xb1_ref[0]        # (2h, TM)
    h = z[:hid] + jnp.tanh(z[hid:])                                     # (h, TM)

    # Skip blocks: h + tanh(W h + b).  Static Python loop (unrolled at trace).
    b = b_ref[...]
    for i in range(n_skip):
        w_i = wskip_ref[i * hid:(i + 1) * hid, :]                       # (h, h)
        b_i = b[i * hid:(i + 1) * hid]                                  # (h, 1)
        h = h + jnp.tanh(jnp.dot(w_i, h,
                                 preferred_element_type=jnp.float32) + b_i)

    # Output Linear -> lane-dense (C, TM) store.
    out_ref[0] = jnp.dot(wo_ref[...], h,
                         preferred_element_type=jnp.float32) + b[n_skip * hid:]


def _positional_features(H, W, kh, kw):
    """Feature-major positional encoding: (2*nh + 2*nw + 2, H*W).

    Column s = h_idx*W + w_idx holds [sin(pi*kh*hn); cos(pi*kh*hn); hn;
    sin(pi*kw*wn); cos(pi*kw*wn); wn], matching torch.cat((h, w), dim=2).
    """
    hh, ww = jnp.meshgrid(jnp.arange(H), jnp.arange(W), indexing="ij")
    hn = hh.reshape(-1).astype(jnp.float32) / (H - 1)                   # (H*W,)
    wn = ww.reshape(-1).astype(jnp.float32) / (W - 1)
    argh = jnp.pi * kh[:, None] * hn[None, :]                           # (nh, H*W)
    argw = jnp.pi * kw[:, None] * wn[None, :]                           # (nw, H*W)
    return jnp.concatenate([jnp.sin(argh), jnp.cos(argh), hn[None, :],
                            jnp.sin(argw), jnp.cos(argw), wn[None, :]], axis=0)


def shotgun_mlp_forward(x, params, *, H, W, C, Cnone, kh, kw, hidden,
                        n_hidden_layers, tile_m=256):
    """Shotgun_MLP.forward.

    params: PyTorch-layout (out_features, in_features) Linear params:
      [(w_res1, b_res1), (w_nl1, b_nl1)]
      + [(w_nl_i, b_nl_i)] * (n_hidden_layers - 1)
      + [(w_out, b_out)]
    """
    Nb, nx = x.shape
    n_skip = n_hidden_layers - 1
    assert n_skip >= 1, "weight packing assumes n_hidden_layers >= 2"
    # TODO(synk): first block assumes n_in != hidden (explicit linear residual
    # branch); this always holds for Shotgun_MLP's positional-encoded input.

    (w_res, b_res), (w_nl, b_nl) = params[0], params[1]
    skips = params[2:2 + n_skip]
    w_out, b_out = params[-1]

    # Block-1 weights fused; x-columns folded into a tiny per-batch bias.
    w_cat = jnp.concatenate([w_res, w_nl], axis=0)                      # (2h, n_in)
    w_x, w_pos = w_cat[:, :nx], w_cat[:, nx:]                           # (2h,nx),(2h,n_pos)
    b1 = jnp.concatenate([b_res, b_nl])                                 # (2h,)
    xb1 = (x @ w_x.T + b1)[:, :, None]                                  # (Nb, 2h, 1)

    w_skip = jnp.concatenate([wi for wi, _ in skips], axis=0)           # (n_skip*h, h)
    b_rest = jnp.concatenate([bi for _, bi in skips] + [b_out])[:, None]

    # Positional features (plain-JAX glue), shared across the batch.
    pos = _positional_features(H, W, kh, kw)                            # (n_pos, HW)
    n_pos, n_grid = pos.shape
    g_pad = pl.cdiv(n_grid, tile_m) * tile_m
    if g_pad != n_grid:
        pos = jnp.pad(pos, ((0, 0), (0, g_pad - n_grid)))

    kernel = functools.partial(_shotgun_mlp_kernel, hid=hidden, n_skip=n_skip)
    out = pl.pallas_call(
        kernel,
        out_shape=jax.ShapeDtypeStruct((Nb, C, g_pad), jnp.float32),
        grid_spec=pltpu.PrefetchScalarGridSpec(
            num_scalar_prefetch=0,
            # Pixel tiles outer, batch inner: pos block index is unchanged
            # across batch steps -> no re-DMA of the shared positional tile.
            grid=(g_pad // tile_m, Nb),
            in_specs=[
                pl.BlockSpec((n_pos, tile_m), lambda i, b: (0, i)),     # streamed
                pl.BlockSpec((1, 2 * hidden, 1), lambda i, b: (b, 0, 0)),
                pl.BlockSpec(w_pos.shape, lambda i, b: (0, 0)),         # resident
                pl.BlockSpec(w_skip.shape, lambda i, b: (0, 0)),
                pl.BlockSpec(w_out.shape, lambda i, b: (0, 0)),
                pl.BlockSpec(b_rest.shape, lambda i, b: (0, 0)),
            ],
            out_specs=pl.BlockSpec((1, C, tile_m), lambda i, b: (b, 0, i)),
        ),
        compiler_params=pltpu.CompilerParams(
            dimension_semantics=("parallel", "parallel")),
    )(pos, xb1, w_pos, w_skip, w_out, b_rest)

    out = out[:, :, :n_grid]                                            # (Nb, C, HW)
    if Cnone:
        return out[:, 0, :].reshape(Nb, H, W)
    return out.reshape(Nb, C, H, W)


def _reference(x, params, *, H, W, C, Cnone, kh, kw):
    """Pure-JAX mirror of the PyTorch Shotgun_MLP forward."""
    Nb, nx = x.shape
    Ngrid = H * W
    hh, ww = jnp.meshgrid(jnp.arange(H), jnp.arange(W), indexing="ij")
    h = jnp.broadcast_to(hh.reshape(-1)[None, :].astype(jnp.float32),
                         (Nb, Ngrid)) / (H - 1)
    w = jnp.broadcast_to(ww.reshape(-1)[None, :].astype(jnp.float32),
                         (Nb, Ngrid)) / (W - 1)
    argh = jnp.pi * kh[None, None, :] * h[:, :, None]
    argw = jnp.pi * kw[None, None, :] * w[:, :, None]
    hfeat = jnp.concatenate([jnp.sin(argh), jnp.cos(argh), h[:, :, None]], axis=2)
    wfeat = jnp.concatenate([jnp.sin(argw), jnp.cos(argw), w[:, :, None]], axis=2)
    xb = jnp.broadcast_to(x[:, None, :], (Nb, Ngrid, nx))
    X = jnp.concatenate([xb, hfeat, wfeat], axis=2).reshape(Nb * Ngrid, -1)

    (w_res, b_res), (w_nl, b_nl) = params[0], params[1]
    hcur = X @ w_res.T + b_res + jnp.tanh(X @ w_nl.T + b_nl)
    for w_i, b_i in params[2:-1]:
        hcur = hcur + jnp.tanh(hcur @ w_i.T + b_i)
    w_o, b_o = params[-1]
    Y = hcur @ w_o.T + b_o
    if Cnone:
        return Y.reshape(Nb, H, W)
    return Y.reshape(Nb, Ngrid, C).swapaxes(1, 2).reshape(Nb, C, H, W)


def _make_params(key, n_in, hidden, n_hidden_layers, C):
    n_skip = n_hidden_layers - 1
    ks = jax.random.split(key, 2 * (2 + n_skip + 1))

    def init_lin(kw_, kb_, fan_out, fan_in):
        # PyTorch-like uniform init; module zeroes biases at init, but biases
        # are part of the forward — use nonzero values to exercise that path.
        bound = 1.0 / float(fan_in) ** 0.5
        wgt = jax.random.uniform(kw_, (fan_out, fan_in), jnp.float32, -bound, bound)
        bias = jax.random.uniform(kb_, (fan_out,), jnp.float32, -bound, bound)
        return wgt, bias

    params = [init_lin(ks[0], ks[1], hidden, n_in),       # block 1: res Linear
              init_lin(ks[2], ks[3], hidden, n_in)]       # block 1: nonlin Linear
    for i in range(n_skip):                               # skip blocks
        params.append(init_lin(ks[4 + 2 * i], ks[5 + 2 * i], hidden, hidden))
    params.append(init_lin(ks[-2], ks[-1], C, hidden))    # output Linear
    return params


def _run_case(key, *, nx, H, W, C, Cnone, hidden, n_hidden_layers, pe, tile_m):
    nh = int(np.ceil((np.log(H) - np.log(1)) / np.log(pe)))
    nw = int(np.ceil((np.log(W) - np.log(1)) / np.log(pe)))
    kh = jnp.asarray(pe ** np.arange(nh), jnp.float32)
    kw = jnp.asarray(pe ** np.arange(nw), jnp.float32)
    n_in = nx + 2 * nh + 2 * nw + 2

    kp, kx = jax.random.split(key)
    params = _make_params(kp, n_in, hidden, n_hidden_layers, C)
    Nb = 2
    x = jax.random.normal(kx, (Nb, nx), jnp.float32)

    out = shotgun_mlp_forward(x, params, H=H, W=W, C=C, Cnone=Cnone,
                              kh=kh, kw=kw, hidden=hidden,
                              n_hidden_layers=n_hidden_layers, tile_m=tile_m)
    jax.block_until_ready(out)

    ref = _reference(x, params, H=H, W=W, C=C, Cnone=Cnone, kh=kh, kw=kw)
    expected_shape = (Nb, H, W) if Cnone else (Nb, C, H, W)
    assert out.shape == expected_shape, (out.shape, expected_shape)
    assert jnp.allclose(out, ref, atol=1e-3, rtol=1e-3), \
        "mismatch vs pure-JAX reference"


if __name__ == "__main__":
    key = jax.random.PRNGKey(0)
    k1, k2 = jax.random.split(key)

    # Case 1: ny = (H, W) -> Cnone path (module default n_hidden_layers=3).
    _run_case(k1, nx=4, H=16, W=16, C=1, Cnone=True,
              hidden=128, n_hidden_layers=3, pe=1.3, tile_m=256)

    # Case 2: ny = (C, H, W) -> channel path.
    _run_case(k2, nx=4, H=8, W=8, C=2, Cnone=False,
              hidden=128, n_hidden_layers=3, pe=1.3, tile_m=128)

    print("KERNEL_OK")
</pallas_src>

<mosaic_0001>
module attributes {stable_mosaic.version = 11 : i64} {
  func.func @_shotgun_mlp_kernel(%arg0: i32, %arg1: i32, %arg2: memref<46x256xf32, #tpu.memory_space<vmem>>, %arg3: memref<1x256x1xf32, #tpu.memory_space<vmem>>, %arg4: memref<256x46xf32, #tpu.memory_space<vmem>>, %arg5: memref<256x128xf32, #tpu.memory_space<vmem>>, %arg6: memref<1x128xf32, #tpu.memory_space<vmem>>, %arg7: memref<257x1xf32, #tpu.memory_space<vmem>>, %arg8: memref<1x1x256xf32, #tpu.memory_space<vmem>>) attributes {dimension_semantics = [#tpu.dimension_semantics<parallel>, #tpu.dimension_semantics<parallel>], iteration_bounds = array<i64: 1, 2>, scalar_prefetch = 0 : i64, scratch_operands = 0 : i64, tpu.core_type = #tpu.core_type<tc>, window_params = [{transform_indices = @transform_0, window_bounds = array<i64: 46, 256>}, {transform_indices = @transform_1, window_bounds = array<i64: 1, 256, 1>}, {pipeline_mode = #tpu.pipeline_mode<synchronous>, transform_indices = @transform_2, window_bounds = array<i64: 256, 46>}, {pipeline_mode = #tpu.pipeline_mode<synchronous>, transform_indices = @transform_3, window_bounds = array<i64: 256, 128>}, {pipeline_mode = #tpu.pipeline_mode<synchronous>, transform_indices = @transform_4, window_bounds = array<i64: 1, 128>}, {pipeline_mode = #tpu.pipeline_mode<synchronous>, transform_indices = @transform_5, window_bounds = array<i64: 257, 1>}, {transform_indices = @transform_6, window_bounds = array<i64: 1, 1, 256>}]} {
    %c0 = arith.constant 0 : index
    %c0_0 = arith.constant 0 : index
    %0 = vector.load %arg4[%c0, %c0_0] : memref<256x46xf32, #tpu.memory_space<vmem>>, vector<256x46xf32>
    %c0_1 = arith.constant 0 : index
    %c0_2 = arith.constant 0 : index
    %1 = vector.load %arg2[%c0_1, %c0_2] : memref<46x256xf32, #tpu.memory_space<vmem>>, vector<46x256xf32>
    %cst = arith.constant dense<0.000000e+00> : vector<256x256xf32>
    %2 = tpu.matmul %0, %1, %cst {dimension_numbers = #tpu.dot_dimension_numbers<[1], [0], [0], [1], [0, 0, 1, 1], [], []>} : vector<256x46xf32>, vector<46x256xf32>, vector<256x256xf32> -> vector<256x256xf32>
    %c0_3 = arith.constant 0 : index
    %c0_4 = arith.constant 0 : index
    %c0_5 = arith.constant 0 : index
    %3 = vector.load %arg3[%c0_3, %c0_4, %c0_5] : memref<1x256x1xf32, #tpu.memory_space<vmem>>, vector<1x256x1xf32>
    %4 = vector.shape_cast %3 : vector<1x256x1xf32> to vector<256x1xf32>
    %5 = vector.broadcast %4 : vector<256x1xf32> to vector<256x256xf32>
    %6 = arith.addf %2, %5 : vector<256x256xf32>
    %7 = vector.extract_strided_slice %6 {offsets = [0, 0], sizes = [128, 256], strides = [1, 1]} : vector<256x256xf32> to vector<128x256xf32>
    %8 = vector.extract_strided_slice %6 {offsets = [128, 0], sizes = [128, 256], strides = [1, 1]} : vector<256x256xf32> to vector<128x256xf32>
    %9 = math.tanh %8 : vector<128x256xf32>
    %10 = arith.addf %7, %9 : vector<128x256xf32>
    %c0_6 = arith.constant 0 : index
    %c0_7 = arith.constant 0 : index
    %11 = vector.load %arg7[%c0_6, %c0_7] : memref<257x1xf32, #tpu.memory_space<vmem>>, vector<257x1xf32>
    %c0_8 = arith.constant 0 : index
    %c0_9 = arith.constant 0 : index
    %12 = vector.load %arg5[%c0_8, %c0_9] : memref<256x128xf32, #tpu.memory_space<vmem>>, vector<128x128xf32>
    %13 = vector.extract_strided_slice %11 {offsets = [0, 0], sizes = [128, 1], strides = [1, 1]} : vector<257x1xf32> to vector<128x1xf32>
    %cst_10 = arith.constant dense<0.000000e+00> : vector<128x256xf32>
    %14 = tpu.matmul %12, %10, %cst_10 {dimension_numbers = #tpu.dot_dimension_numbers<[1], [0], [0], [1], [0, 0, 1, 1], [], []>} : vector<128x128xf32>, vector<128x256xf32>, vector<128x256xf32> -> vector<128x256xf32>
    %15 = vector.broadcast %13 : vector<128x1xf32> to vector<128x256xf32>
    %16 = arith.addf %14, %15 : vector<128x256xf32>
    %17 = math.tanh %16 : vector<128x256xf32>
    %18 = arith.addf %10, %17 : vector<128x256xf32>
    %c128 = arith.constant 128 : index
    %c0_11 = arith.constant 0 : index
    %19 = vector.load %arg5[%c128, %c0_11] : memref<256x128xf32, #tpu.memory_space<vmem>>, vector<128x128xf32>
    %20 = vector.extract_strided_slice %11 {offsets = [128, 0], sizes = [128, 1], strides = [1, 1]} : vector<257x1xf32> to vector<128x1xf32>
    %cst_12 = arith.constant dense<0.000000e+00> : vector<128x256xf32>
    %21 = tpu.matmul %19, %18, %cst_12 {dimension_numbers = #tpu.dot_dimension_numbers<[1], [0], [0], [1], [0, 0, 1, 1], [], []>} : vector<128x128xf32>, vector<128x256xf32>, vector<128x256xf32> -> vector<128x256xf32>
    %22 = vector.broadcast %20 : vector<128x1xf32> to vector<128x256xf32>
    %23 = arith.addf %21, %22 : vector<128x256xf32>
    %24 = math.tanh %23 : vector<128x256xf32>
    %25 = arith.addf %18, %24 : vector<128x256xf32>
    %c0_13 = arith.constant 0 : index
    %c0_14 = arith.constant 0 : index
    %26 = vector.load %arg6[%c0_13, %c0_14] : memref<1x128xf32, #tpu.memory_space<vmem>>, vector<1x128xf32>
    %cst_15 = arith.constant dense<0.000000e+00> : vector<1x256xf32>
    %27 = tpu.matmul %26, %25, %cst_15 {dimension_numbers = #tpu.dot_dimension_numbers<[1], [0], [0], [1], [0, 0, 1, 1], [], []>} : vector<1x128xf32>, vector<128x256xf32>, vector<1x256xf32> -> vector<1x256xf32>
    %28 = vector.extract_strided_slice %11 {offsets = [256, 0], sizes = [1, 1], strides = [1, 1]} : vector<257x1xf32> to vector<1x1xf32>
    %29 = vector.broadcast %28 : vector<1x1xf32> to vector<1x256xf32>
    %30 = arith.addf %27, %29 : vector<1x256xf32>
    %c0_16 = arith.constant 0 : index
    %c0_17 = arith.constant 0 : index
    %c0_18 = arith.constant 0 : index
    %31 = vector.load %arg8[%c0_16, %c0_17, %c0_18] : memref<1x1x256xf32, #tpu.memory_space<vmem>>, vector<1x1x256xf32>
    %32 = vector.shape_cast %31 : vector<1x1x256xf32> to vector<1x256xf32>
    %33 = vector.shape_cast %30 : vector<1x256xf32> to vector<1x1x256xf32>
    tpu.vector_store %arg8[%c0_16, %c0_17, %c0_18], %33 {strides = array<i32>} : memref<1x1x256xf32, #tpu.memory_space<vmem>>, vector<1x1x256xf32>,
    return
  }
  func.func @transform_0(%arg0: i32, %arg1: i32) -> (i32, i32) {
    %c0_i32 = arith.constant 0 : i32
    %c0_i32_0 = arith.constant 0 : i32
    return %c0_i32, %arg0 : i32, i32
  }
  func.func @transform_1(%arg0: i32, %arg1: i32) -> (i32, i32, i32) {
    %c0_i32 = arith.constant 0 : i32
    %c0_i32_0 = arith.constant 0 : i32
    %c0_i32_1 = arith.constant 0 : i32
    return %arg1, %c0_i32, %c0_i32_0 : i32, i32, i32
  }
  func.func @transform_2(%arg0: i32, %arg1: i32) -> (i32, i32) {
    %c0_i32 = arith.constant 0 : i32
    %c0_i32_0 = arith.constant 0 : i32
    %c0_i32_1 = arith.constant 0 : i32
    return %c0_i32, %c0_i32_0 : i32, i32
  }
  func.func @transform_3(%arg0: i32, %arg1: i32) -> (i32, i32) {
    %c0_i32 = arith.constant 0 : i32
    %c0_i32_0 = arith.constant 0 : i32
    %c0_i32_1 = arith.constant 0 : i32
    return %c0_i32, %c0_i32_0 : i32, i32
  }
  func.func @transform_4(%arg0: i32, %arg1: i32) -> (i32, i32) {
    %c0_i32 = arith.constant 0 : i32
    %c0_i32_0 = arith.constant 0 : i32
    %c0_i32_1 = arith.constant 0 : i32
    return %c0_i32, %c0_i32_0 : i32, i32
  }
  func.func @transform_5(%arg0: i32, %arg1: i32) -> (i32, i32) {
    %c0_i32 = arith.constant 0 : i32
    %c0_i32_0 = arith.constant 0 : i32
    %c0_i32_1 = arith.constant 0 : i32
    return %c0_i32, %c0_i32_0 : i32, i32
  }
  func.func @transform_6(%arg0: i32, %arg1: i32) -> (i32, i32, i32) {
    %c0_i32 = arith.constant 0 : i32
    %c0_i32_0 = arith.constant 0 : i32
    return %arg1, %c0_i32, %arg0 : i32, i32, i32
  }
}

</mosaic_0001>

<llo_original>
// kernel: tpu_custom_call.1
$region0: #{tpu_custom_call.1}
  #allocation0 [shape = 'u32[]', space=smem, size = 0x4, offset = 0x4, fixed_abs, tag = 'smem constant byte address 0x4 - core index']
  #allocation1 [shape = 'u32[72,128]{1,0:T(1,128)}', space=vmem, size = 0x9000, scoped, tag = 'internal scratch']
  %s0 = inlined_call_operand.vmem [shape: f32[46,256], index: 0, kind: input, shape index: {}]
  %s1 = inlined_call_operand.vmem [shape: f32[2,256,1], index: 1, kind: input, shape index: {}]
  %s2 = inlined_call_operand.vmem [shape: f32[256,46], index: 2, kind: input, shape index: {}]
  %s3 = inlined_call_operand.vmem [shape: f32[256,128], index: 3, kind: input, shape index: {}]
  %s4 = inlined_call_operand.vmem [shape: f32[1,128], index: 4, kind: input, shape index: {}]
  %s5 = inlined_call_operand.vmem [shape: f32[257,1], index: 5, kind: input, shape index: {}]
  %s6 = inlined_call_operand.hbm [shape: f32[2,1,256], index: 6, kind: output, shape index: {}]
  %s7 = sld [smem:[#allocation0]]
  $region57: #{tpu_custom_call.1} parent=0
    _
  %s9 = ssub.s32 1, %s7
  %s10 = scalar_select 0, %s9, %s7
  $region1: #{tpu_custom_call.1} parent=0
    #allocation2 [shape = 'u8[2048]{0}', space=vmem, size = 0x800, scoped, tag = 'output window, operand 0']
    #allocation3 [shape = 's32[2]{0}', space=sflag, size = 0x8, scoped, tag = 'scoped memory for tpu_custom_call.1']
    %11 = vsyncpa [#allocation3], 0
    %s12 = scalar_lea.sflag [#allocation3], 1
    %13 = vsyncpa %s12, 0
    loop: start=0, step=1, limit=4
    $region2: #{tpu_custom_call.1} parent=1 // loop_pre_header
      _
    $region3: #{tpu_custom_call.1} parent=1 // loop_header
      %s15 = sphi 0, %s19
      %p16 = scmp.ge.s32.totalorder %s15, 4
      %s22 = sphi 0, %s34
      %s23 = sphi 0, %s30
      %s24 = sphi 0, %s22
      %s25 = sphi 0, %s23
      %s26 = sphi 0, %s24
      %s27 = sphi 0, %s25
      %s37 = sphi 0, %s39
      %s40 = sphi 0, %s37
      %s41 = sphi 0, %s40
      %s57 = sphi 0, %s41
      %s63 = sphi 0, %s65
      %s66 = sphi 0, %s63
      %s67 = sphi 0, %s66
      %s83 = sphi 0, %s67
      %s87 = sphi 0, %s87
      %s89 = sphi 0, %s87
      %s90 = sphi 0, %s89
      %s104 = sphi 0, %s90
      %s108 = sphi 0, %s108
      %s110 = sphi 0, %s108
      %s111 = sphi 0, %s110
      %s125 = sphi 0, %s111
      %s129 = sphi 0, %s129
      %s131 = sphi 0, %s129
      %s132 = sphi 0, %s131
      %s146 = sphi 0, %s132
      %s150 = sphi 0, %s150
      %s152 = sphi 0, %s150
      %s153 = sphi 0, %s152
      %s167 = sphi 0, %s153
      %s175 = sphi 0, %s177
      %s178 = sphi 0, %s175
      %s179 = sphi 0, %s178
      %s195 = sphi 0, %s179
    $region4: #{tpu_custom_call.1} parent=1 // loop_header_branch
      %18 = sbr.rel (%p16) target = $region8
    $region5: #{tpu_custom_call.1} parent=1 // loop_body
      %s20 = ssub.s32 %s15, 1
      %s21 = ssub.s32 %s15, 2
      %s28 = sadd.s32 1, %s23
      %p29 = scmp.ge.s32.totalorder %s28, 2
      %s30 = scalar_select %p29, 0, %s28
      %s31 = sadd.s32 1, %s22
      %s32 = scalar_select %p29, %s31, %s22
      %p33 = scmp.ge.s32.totalorder %s32, 1
      %s34 = scalar_select %p33, 0, %s32
      %s35 = ssub.s32 %s22, %s34
      %p36 = scmp.eq.s32.totalorder %s35, 0
      %s38 = sadd.s32 %s37, 1
      %s39 = scalar_select %p36, %s37, %s38
      %p42 = pneg %p36
      %p43 = scmp.eq.s32.totalorder %s15, 1
      %p44 = por %p42, %p43
      %p45 = scmp.ne.s32.totalorder %s37, %s40
      %p46 = scmp.eq.s32.totalorder %s15, 0
      %p47 = por %p45, %p46
      %p48 = scmp.ne.s32.totalorder %s37, %s40
      %p49 = scmp.eq.s32.totalorder %s20, 1
      %p50 = por %p48, %p49
      %p51 = scmp.ne.s32.totalorder %s40, %s41
      %p52 = scmp.eq.s32.totalorder %s20, 0
      %p53 = por %p51, %p52
      %p54 = scmp.ne.s32.totalorder %s40, %s41
      %p55 = scmp.eq.s32.totalorder %s21, 1
      %p56 = por %p54, %p55
      %p58 = scmp.ne.s32.totalorder %s41, %s57
      %p59 = scmp.eq.s32.totalorder %s21, 0
      %p60 = por %p58, %p59
      %s61 = ssub.s32 %s23, %s30
      %p62 = scmp.eq.s32.totalorder %s61, 0
      %s64 = sadd.s32 %s63, 1
      %s65 = scalar_select %p62, %s63, %s64
      %p68 = pneg %p62
      %p69 = scmp.eq.s32.totalorder %s15, 1
      %p70 = por %p68, %p69
      %p71 = scmp.ne.s32.totalorder %s63, %s66
      %p72 = scmp.eq.s32.totalorder %s15, 0
      %p73 = por %p71, %p72
      %p74 = scmp.ne.s32.totalorder %s63, %s66
      %p75 = scmp.eq.s32.totalorder %s20, 1
      %p76 = por %p74, %p75
      %p77 = scmp.ne.s32.totalorder %s66, %s67
      %p78 = scmp.eq.s32.totalorder %s20, 0
      %p79 = por %p77, %p78
      %p80 = scmp.ne.s32.totalorder %s66, %s67
      %p81 = scmp.eq.s32.totalorder %s21, 1
      %p82 = por %p80, %p81
      %p84 = scmp.ne.s32.totalorder %s67, %s83
      %p85 = scmp.eq.s32.totalorder %s21, 0
      %p86 = por %p84, %p85
      %s88 = sadd.s32 %s87, 1
      %p91 = scmp.eq.s32.totalorder %s15, 1
      %p92 = scmp.ne.s32.totalorder %s87, %s89
      %p93 = scmp.eq.s32.totalorder %s15, 0
      %p94 = por %p92, %p93
      %p95 = scmp.ne.s32.totalorder %s87, %s89
      %p96 = scmp.eq.s32.totalorder %s20, 1
      %p97 = por %p95, %p96
      %p98 = scmp.ne.s32.totalorder %s89, %s90
      %p99 = scmp.eq.s32.totalorder %s20, 0
      %p100 = por %p98, %p99
      %p101 = scmp.ne.s32.totalorder %s89, %s90
      %p102 = scmp.eq.s32.totalorder %s21, 1
      %p103 = por %p101, %p102
      %p105 = scmp.ne.s32.totalorder %s90, %s104
      %p106 = scmp.eq.s32.totalorder %s21, 0
      %p107 = por %p105, %p106
      %s109 = sadd.s32 %s108, 1
      %p112 = scmp.eq.s32.totalorder %s15, 1
      %p113 = scmp.ne.s32.totalorder %s108, %s110
      %p114 = scmp.eq.s32.totalorder %s15, 0
      %p115 = por %p113, %p114
      %p116 = scmp.ne.s32.totalorder %s108, %s110
      %p117 = scmp.eq.s32.totalorder %s20, 1
      %p118 = por %p116, %p117
      %p119 = scmp.ne.s32.totalorder %s110, %s111
      %p120 = scmp.eq.s32.totalorder %s20, 0
      %p121 = por %p119, %p120
      %p122 = scmp.ne.s32.totalorder %s110, %s111
      %p123 = scmp.eq.s32.totalorder %s21, 1
      %p124 = por %p122, %p123
      %p126 = scmp.ne.s32.totalorder %s111, %s125
      %p127 = scmp.eq.s32.totalorder %s21, 0
      %p128 = por %p126, %p127
      %s130 = sadd.s32 %s129, 1
      %p133 = scmp.eq.s32.totalorder %s15, 1
      %p134 = scmp.ne.s32.totalorder %s129, %s131
      %p135 = scmp.eq.s32.totalorder %s15, 0
      %p136 = por %p134, %p135
      %p137 = scmp.ne.s32.totalorder %s129, %s131
      %p138 = scmp.eq.s32.totalorder %s20, 1
      %p139 = por %p137, %p138
      %p140 = scmp.ne.s32.totalorder %s131, %s132
      %p141 = scmp.eq.s32.totalorder %s20, 0
      %p142 = por %p140, %p141
      %p143 = scmp.ne.s32.totalorder %s131, %s132
      %p144 = scmp.eq.s32.totalorder %s21, 1
      %p145 = por %p143, %p144
      %p147 = scmp.ne.s32.totalorder %s132, %s146
      %p148 = scmp.eq.s32.totalorder %s21, 0
      %p149 = por %p147, %p148
      %s151 = sadd.s32 %s150, 1
      %p154 = scmp.eq.s32.totalorder %s15, 1
      %p155 = scmp.ne.s32.totalorder %s150, %s152
      %p156 = scmp.eq.s32.totalorder %s15, 0
      %p157 = por %p155, %p156
      %p158 = scmp.ne.s32.totalorder %s150, %s152
      %p159 = scmp.eq.s32.totalorder %s20, 1
      %p160 = por %p158, %p159
      %p161 = scmp.ne.s32.totalorder %s152, %s153
      %p162 = scmp.eq.s32.totalorder %s20, 0
      %p163 = por %p161, %p162
      %p164 = scmp.ne.s32.totalorder %s152, %s153
      %p165 = scmp.eq.s32.totalorder %s21, 1
      %p166 = por %p164, %p165
      %p168 = scmp.ne.s32.totalorder %s153, %s167
      %p169 = scmp.eq.s32.totalorder %s21, 0
      %p170 = por %p168, %p169
      %s171 = ssub.s32 %s23, %s30
      %s172 = ssub.s32 %s22, %s34
      %s173 = sor.u32 %s171, %s172
      %p174 = scmp.eq.s32.totalorder %s173, 0
      %s176 = sadd.s32 %s175, 1
      %s177 = scalar_select %p174, %s175, %s176
      %p180 = pneg %p174
      %p181 = scmp.eq.s32.totalorder %s15, 1
      %p182 = por %p180, %p181
      %p183 = scmp.ne.s32.totalorder %s175, %s178
      %p184 = scmp.eq.s32.totalorder %s15, 0
      %p185 = por %p183, %p184
      %p186 = scmp.ne.s32.totalorder %s175, %s178
      %p187 = scmp.eq.s32.totalorder %s20, 1
      %p188 = por %p186, %p187
      %p189 = scmp.ne.s32.totalorder %s178, %s179
      %p190 = scmp.eq.s32.totalorder %s20, 0
      %p191 = por %p189, %p190
      %p192 = scmp.ne.s32.totalorder %s178, %s179
      %p193 = scmp.eq.s32.totalorder %s21, 1
      %p194 = por %p192, %p193
      %p196 = scmp.ne.s32.totalorder %s179, %s195
      %p197 = scmp.eq.s32.totalorder %s21, 0
      %p198 = por %p196, %p197
      %p199 = scmp.le.s32.totalorder 1, %s15
      %p200 = scmp.lt.s32.totalorder %s15, 3
      %p201 = pnand %p199, %p200
      %p202 = pneg %p201
      // Predicated region
      $region9: #{tpu_custom_call.1} parent=5 // pred_check
        _
      $region10: #{tpu_custom_call.1} parent=5 // pred_check_branch
        %204 = sbr.rel (%p201) target = $region12
      $region11: #{tpu_custom_call.1} parent=5 // pred_region
        %s205 = ssub.s32 %s15, 1
        // Predicated region
        $region13: #{tpu_custom_call.1} parent=11 // pred_check
          %p206 = pneg %p53
        $region14: #{tpu_custom_call.1} parent=11 // pred_check_branch
          %208 = sbr.rel (%p206) target = $region16
        $region15: #{tpu_custom_call.1} parent=11 // pred_region
          %s209 = smul.u32 2, %s24
          %p210 = scmp.lt.s32.totalorder %s209, 1
          %s211 = scalar_select %p210, %s209, 1
          %s212 = smul.addr %s211, 8
          %s213 = scalar_lea.vmem %s0, %s212
          %s214 = smul.u32 2, %s24
        $region16: #{tpu_custom_call.1} parent=11 // pred_fallthru
          _
        // Predicated region
        $region17: #{tpu_custom_call.1} parent=11 // pred_check
          %p215 = pneg %p100
        $region18: #{tpu_custom_call.1} parent=11 // pred_check_branch
          %217 = sbr.rel (%p215) target = $region20
        $region19: #{tpu_custom_call.1} parent=11 // pred_region
          _
        $region20: #{tpu_custom_call.1} parent=11 // pred_fallthru
          _
        // Predicated region
        $region21: #{tpu_custom_call.1} parent=11 // pred_check
          %p218 = pneg %p121
        $region22: #{tpu_custom_call.1} parent=11 // pred_check_branch
          %220 = sbr.rel (%p218) target = $region24
        $region23: #{tpu_custom_call.1} parent=11 // pred_region
          _
        $region24: #{tpu_custom_call.1} parent=11 // pred_fallthru
          _
        // Predicated region
        $region25: #{tpu_custom_call.1} parent=11 // pred_check
          %p221 = pneg %p142
        $region26: #{tpu_custom_call.1} parent=11 // pred_check_branch
          %223 = sbr.rel (%p221) target = $region28
        $region27: #{tpu_custom_call.1} parent=11 // pred_region
          _
        $region28: #{tpu_custom_call.1} parent=11 // pred_fallthru
          _
        // Predicated region
        $region29: #{tpu_custom_call.1} parent=11 // pred_check
          %p224 = pneg %p163
        $region30: #{tpu_custom_call.1} parent=11 // pred_check_branch
          %226 = sbr.rel (%p224) target = $region32
        $region31: #{tpu_custom_call.1} parent=11 // pred_region
          _
        $region32: #{tpu_custom_call.1} parent=11 // pred_fallthru
          _
      $region12: #{tpu_custom_call.1} parent=5 // pred_fallthru
        _
      %p227 = scmp.lt.s32.totalorder %s15, 2
      // Predicated region
      $region33: #{tpu_custom_call.1} parent=5 // pred_check
        %p228 = pneg %p227
      $region34: #{tpu_custom_call.1} parent=5 // pred_check_branch
        %230 = sbr.rel (%p228) target = $region36
      $region35: #{tpu_custom_call.1} parent=5 // pred_region
        // Predicated region
        $region37: #{tpu_custom_call.1} parent=35 // pred_check
          %p231 = pneg %p73
        $region38: #{tpu_custom_call.1} parent=35 // pred_check_branch
          %233 = sbr.rel (%p231) target = $region40
        $region39: #{tpu_custom_call.1} parent=35 // pred_region
          %p234 = scmp.lt.s32.totalorder %s23, 1
          %s235 = scalar_select %p234, %s23, 1
          %s236 = smul.addr %s235, 32
          %s237 = smul.addr %s236, 8
          %s238 = scalar_lea.vmem %s1, %s237
        $region40: #{tpu_custom_call.1} parent=35 // pred_fallthru
          _
      $region36: #{tpu_custom_call.1} parent=5 // pred_fallthru
        _
      %p239 = scmp.le.s32.totalorder 1, %s15
      %p240 = scmp.lt.s32.totalorder %s15, 3
      %p241 = pnand %p239, %p240
      %p242 = pneg %p241
      // Predicated region
      $region41: #{tpu_custom_call.1} parent=5 // pred_check
        _
      $region42: #{tpu_custom_call.1} parent=5 // pred_check_branch
        %244 = sbr.rel (%p241) target = $region44
      $region43: #{tpu_custom_call.1} parent=5 // pred_region
        %s245 = ssub.s32 %s15, 1
        %s246 = smul.u32 2, %s24
        %p247 = scmp.lt.s32.totalorder %s246, 1
        %s248 = scalar_select %p247, %s246, 1
        %s249 = smul.addr %s248, 8
        %s250 = scalar_lea.vmem %s0, %s249
        %p251 = pneg %p53
        %p252 = pneg %p50
        %p253 = scmp.lt.s32.totalorder %s25, 1
        %s254 = scalar_select %p253, %s25, 1
        %s255 = smul.addr %s254, 32
        %s256 = smul.addr %s255, 8
        %s257 = scalar_lea.vmem %s1, %s256
        %p258 = pneg %p79
        %p259 = pneg %p76
        %p260 = pneg %p100
        %p261 = pneg %p97
        %p262 = pneg %p121
        %p263 = pneg %p118
        %p264 = pneg %p142
        %p265 = pneg %p139
        %p266 = pneg %p163
        %p267 = pneg %p160
        %p268 = pneg %p191
        %p269 = pneg %p188
        %s270 = sand.u32 %s178, 1
        %s271 = scalar_lea.sflag [#allocation3], %s270
        %s272 = sand.u32 %s178, 1
        %s273 = smul.addr %s272, 2
        %s274 = scalar_lea.vmem [#allocation2], %s273
        %s275 = smul.u32 2, %s24
        %p276 = scmp.lt.s32.totalorder %s275, 1
        %s277 = scalar_select %p276, %s275, 1
        %s278 = smul.addr %s277, 8
        %s279 = scalar_lea.vmem %s0, %s278
        %s280 = smul.u32 2, %s24
        %p281 = scmp.lt.s32.totalorder %s25, 1
        %s282 = scalar_select %p281, %s25, 1
        %s283 = smul.addr %s282, 32
        %s284 = smul.addr %s283, 8
        %s285 = scalar_lea.vmem %s1, %s284
        %s286 = smul.u32 2, %s24
        %v287 = vld [vmem:[%s2] sm:$0xff]
        %v288 = vld [vmem:[%s2 + $0x8] sm:$0xff]
        %v289 = vld [vmem:[%s2 + $0x10] sm:$0xff]
        %v290 = vld [vmem:[%s2 + $0x18] sm:$0xff]
        %v291 = vld [vmem:[%s2 + $0x20] sm:$0xff]
        %v292 = vld [vmem:[%s2 + $0x28] sm:$0xff]
        %v293 = vld [vmem:[%s2 + $0x30] sm:$0xff]
        %v294 = vld [vmem:[%s2 + $0x38] sm:$0xff]
        %v295 = vld [vmem:[%s2 + $0x40] sm:$0xff]
        %v296 = vld [vmem:[%s2 + $0x48] sm:$0xff]
        %v297 = vld [vmem:[%s2 + $0x50] sm:$0xff]
        %v298 = vld [vmem:[%s2 + $0x58] sm:$0xff]
        %v299 = vld [vmem:[%s2 + $0x60] sm:$0xff]
        %v300 = vld [vmem:[%s2 + $0x68] sm:$0xff]
        %v301 = vld [vmem:[%s2 + $0x70] sm:$0xff]
        %v302 = vld [vmem:[%s2 + $0x78] sm:$0xff]
        %v303 = vld [vmem:[%s2 + $0x80] sm:$0xff]
        %v304 = vld [vmem:[%s2 + $0x88] sm:$0xff]
        %v305 = vld [vmem:[%s2 + $0x90] sm:$0xff]
        %v306 = vld [vmem:[%s2 + $0x98] sm:$0xff]
        %v307 = vld [vmem:[%s2 + $0xa0] sm:$0xff]
        %v308 = vld [vmem:[%s2 + $0xa8] sm:$0xff]
        %v309 = vld [vmem:[%s2 + $0xb0] sm:$0xff]
        %v310 = vld [vmem:[%s2 + $0xb8] sm:$0xff]
        %v311 = vld [vmem:[%s2 + $0xc0] sm:$0xff]
        %v312 = vld [vmem:[%s2 + $0xc8] sm:$0xff]
        %v313 = vld [vmem:[%s2 + $0xd0] sm:$0xff]
        %v314 = vld [vmem:[%s2 + $0xd8] sm:$0xff]
        %v315 = vld [vmem:[%s2 + $0xe0] sm:$0xff]
        %v316 = vld [vmem:[%s2 + $0xe8] sm:$0xff]
        %v317 = vld [vmem:[%s2 + $0xf0] sm:$0xff]
        %v318 = vld [vmem:[%s2 + $0xf8] sm:$0xff]
        %v319 = vld [vmem:[%s279] sm:$0xff]
        %v320 = vld [vmem:[%s279 + $0x8] sm:$0xff]
        %v321 = vld [vmem:[%s279 + $0x10] sm:$0xff]
        %v322 = vld [vmem:[%s279 + $0x18] sm:$0xff]
        %v323 = vld [vmem:[%s279 + $0x20] sm:$0xff]
        %v324 = vld [vmem:[%s279 + $0x28] sm:$0xff]
        %v325 = vld [vmem:[%s279 + $0x30] sm:$0xff]
        %v326 = vld [vmem:[%s279 + $0x38] sm:$0xff]
        %v327 = vld [vmem:[%s279 + $0x40] sm:$0xff]
        %v328 = vld [vmem:[%s279 + $0x48] sm:$0xff]
        %v329 = vld [vmem:[%s279 + $0x50] sm:$0x3f]
        %v330 = vld [vmem:[%s279 + $0x58] sm:$0x3f]
        %v331 = vld [vmem:[%s285] sm:$0xff]
        %v332 = vld [vmem:[%s285 + $0x8] sm:$0xff]
        %v333 = vld [vmem:[%s285 + $0x10] sm:$0xff]
        %v334 = vld [vmem:[%s285 + $0x18] sm:$0xff]
        %v335 = vld [vmem:[%s285 + $0x20] sm:$0xff]
        %v336 = vld [vmem:[%s285 + $0x28] sm:$0xff]
        %v337 = vld [vmem:[%s285 + $0x30] sm:$0xff]
        %v338 = vld [vmem:[%s285 + $0x38] sm:$0xff]
        %v339 = vld [vmem:[%s285 + $0x40] sm:$0xff]
        %v340 = vld [vmem:[%s285 + $0x48] sm:$0xff]
        %v341 = vld [vmem:[%s285 + $0x50] sm:$0xff]
        %v342 = vld [vmem:[%s285 + $0x58] sm:$0xff]
        %v343 = vld [vmem:[%s285 + $0x60] sm:$0xff]
        %v344 = vld [vmem:[%s285 + $0x68] sm:$0xff]
        %v345 = vld [vmem:[%s285 + $0x70] sm:$0xff]
        %v346 = vld [vmem:[%s285 + $0x78] sm:$0xff]
        %v347 = vld [vmem:[%s285 + $0x80] sm:$0xff]
        %v348 = vld [vmem:[%s285 + $0x88] sm:$0xff]
        %v349 = vld [vmem:[%s285 + $0x90] sm:$0xff]
        %v350 = vld [vmem:[%s285 + $0x98] sm:$0xff]
        %v351 = vld [vmem:[%s285 + $0xa0] sm:$0xff]
        %v352 = vld [vmem:[%s285 + $0xa8] sm:$0xff]
        %v353 = vld [vmem:[%s285 + $0xb0] sm:$0xff]
        %v354 = vld [vmem:[%s285 + $0xb8] sm:$0xff]
        %v355 = vld [vmem:[%s285 + $0xc0] sm:$0xff]
        %v356 = vld [vmem:[%s285 + $0xc8] sm:$0xff]
        %v357 = vld [vmem:[%s285 + $0xd0] sm:$0xff]
        %v358 = vld [vmem:[%s285 + $0xd8] sm:$0xff]
        %v359 = vld [vmem:[%s285 + $0xe0] sm:$0xff]
        %v360 = vld [vmem:[%s285 + $0xe8] sm:$0xff]
        %v361 = vld [vmem:[%s285 + $0xf0] sm:$0xff]
        %v362 = vld [vmem:[%s285 + $0xf8] sm:$0xff]
        %364 = vset.pattern.permute.xlu0 0
        %365 = vperm.xlu0 %364, %v331
        %v366 = vpop.permute.xlu0 %365
        %369 = vset.pattern.permute.xlu0 0
        %370 = vperm.xlu0 %369, %v332
        %v371 = vpop.permute.xlu0 %370
        %374 = vset.pattern.permute.xlu0 0
        %375 = vperm.xlu0 %374, %v333
        %v376 = vpop.permute.xlu0 %375
        %379 = vset.pattern.permute.xlu0 0
        %380 = vperm.xlu0 %379, %v334
        %v381 = vpop.permute.xlu0 %380
        %384 = vset.pattern.permute.xlu0 0
        %385 = vperm.xlu0 %384, %v335
        %v386 = vpop.permute.xlu0 %385
        %389 = vset.pattern.permute.xlu0 0
        %390 = vperm.xlu0 %389, %v336
        %v391 = vpop.permute.xlu0 %390
        %394 = vset.pattern.permute.xlu0 0
        %395 = vperm.xlu0 %394, %v337
        %v396 = vpop.permute.xlu0 %395
        %399 = vset.pattern.permute.xlu0 0
        %400 = vperm.xlu0 %399, %v338
        %v401 = vpop.permute.xlu0 %400
        %404 = vset.pattern.permute.xlu0 0
        %405 = vperm.xlu0 %404, %v339
        %v406 = vpop.permute.xlu0 %405
        %409 = vset.pattern.permute.xlu0 0
        %410 = vperm.xlu0 %409, %v340
        %v411 = vpop.permute.xlu0 %410
        %414 = vset.pattern.permute.xlu0 0
        %415 = vperm.xlu0 %414, %v341
        %v416 = vpop.permute.xlu0 %415
        %419 = vset.pattern.permute.xlu0 0
        %420 = vperm.xlu0 %419, %v342
        %v421 = vpop.permute.xlu0 %420
        %424 = vset.pattern.permute.xlu0 0
        %425 = vperm.xlu0 %424, %v343
        %v426 = vpop.permute.xlu0 %425
        %429 = vset.pattern.permute.xlu0 0
        %430 = vperm.xlu0 %429, %v344
        %v431 = vpop.permute.xlu0 %430
        %434 = vset.pattern.permute.xlu0 0
        %435 = vperm.xlu0 %434, %v345
        %v436 = vpop.permute.xlu0 %435
        %439 = vset.pattern.permute.xlu0 0
        %440 = vperm.xlu0 %439, %v346
        %v441 = vpop.permute.xlu0 %440
        %444 = vset.pattern.permute.xlu0 0
        %445 = vperm.xlu0 %444, %v347
        %v446 = vpop.permute.xlu0 %445
        %449 = vset.pattern.permute.xlu0 0
        %450 = vperm.xlu0 %449, %v348
        %v451 = vpop.permute.xlu0 %450
        %454 = vset.pattern.permute.xlu0 0
        %455 = vperm.xlu0 %454, %v349
        %v456 = vpop.permute.xlu0 %455
        %459 = vset.pattern.permute.xlu0 0
        %460 = vperm.xlu0 %459, %v350
        %v461 = vpop.permute.xlu0 %460
        %464 = vset.pattern.permute.xlu0 0
        %465 = vperm.xlu0 %464, %v351
        %v466 = vpop.permute.xlu0 %465
        %469 = vset.pattern.permute.xlu0 0
        %470 = vperm.xlu0 %469, %v352
        %v471 = vpop.permute.xlu0 %470
        %474 = vset.pattern.permute.xlu0 0
        %475 = vperm.xlu0 %474, %v353
        %v476 = vpop.permute.xlu0 %475
        %479 = vset.pattern.permute.xlu0 0
        %480 = vperm.xlu0 %479, %v354
        %v481 = vpop.permute.xlu0 %480
        %484 = vset.pattern.permute.xlu0 0
        %485 = vperm.xlu0 %484, %v355
        %v486 = vpop.permute.xlu0 %485
        %489 = vset.pattern.permute.xlu0 0
        %490 = vperm.xlu0 %489, %v356
        %v491 = vpop.permute.xlu0 %490
        %494 = vset.pattern.permute.xlu0 0
        %495 = vperm.xlu0 %494, %v357
        %v496 = vpop.permute.xlu0 %495
        %499 = vset.pattern.permute.xlu0 0
        %500 = vperm.xlu0 %499, %v358
        %v501 = vpop.permute.xlu0 %500
        %504 = vset.pattern.permute.xlu0 0
        %505 = vperm.xlu0 %504, %v359
        %v506 = vpop.permute.xlu0 %505
        %509 = vset.pattern.permute.xlu0 0
        %510 = vperm.xlu0 %509, %v360
        %v511 = vpop.permute.xlu0 %510
        %514 = vset.pattern.permute.xlu0 0
        %515 = vperm.xlu0 %514, %v361
        %v516 = vpop.permute.xlu0 %515
        %519 = vset.pattern.permute.xlu0 0
        %520 = vperm.xlu0 %519, %v362
        %v521 = vpop.permute.xlu0 %520
        %vm523 = vcmask 375808
        %v525 = vsel %vm523, %v287, 0
        %v528 = vsel %vm523, %v288, 0
        %v531 = vsel %vm523, %v289, 0
        %v534 = vsel %vm523, %v290, 0
        %v537 = vsel %vm523, %v291, 0
        %v540 = vsel %vm523, %v292, 0
        %v543 = vsel %vm523, %v293, 0
        %v546 = vsel %vm523, %v294, 0
        %v549 = vsel %vm523, %v295, 0
        %v552 = vsel %vm523, %v296, 0
        %v555 = vsel %vm523, %v297, 0
        %v558 = vsel %vm523, %v298, 0
        %v561 = vsel %vm523, %v299, 0
        %v564 = vsel %vm523, %v300, 0
        %v567 = vsel %vm523, %v301, 0
        %v570 = vsel %vm523, %v302, 0
        %v573 = vsel %vm523, %v303, 0
        %v576 = vsel %vm523, %v304, 0
        %v579 = vsel %vm523, %v305, 0
        %v582 = vsel %vm523, %v306, 0
        %v585 = vsel %vm523, %v307, 0
        %v588 = vsel %vm523, %v308, 0
        %v591 = vsel %vm523, %v309, 0
        %v594 = vsel %vm523, %v310, 0
        %v597 = vsel %vm523, %v311, 0
        %v600 = vsel %vm523, %v312, 0
        %v603 = vsel %vm523, %v313, 0
        %v606 = vsel %vm523, %v314, 0
        %v609 = vsel %vm523, %v315, 0
        %v612 = vsel %vm523, %v316, 0
        %v615 = vsel %vm523, %v317, 0
        %v618 = vsel %vm523, %v318, 0
        %vm620 = vcmask 1045504
        %v622 = vsel %vm620, %v329, 0
        %v625 = vsel %vm620, %v330, 0
        %627 = vmatpush.msra.mxu0 0.0
        %628 = vmatpush.msra.mxu0 0.0
        %629 = vmatpush.msra.mxu0 0.0
        %630 = vmatpush.msra.mxu0 0.0
        %631 = vmatpush.msra.mxu0 0.0
        %632 = vmatpush.msra.mxu0 0.0
        %633 = vmatpush.msra.mxu0 0.0
        %634 = vmatpush.msra.mxu0 0.0
        %635 = vmatpush.msra.mxu0 0.0
        %636 = vmatpush.msra.mxu0 0.0
        %637 = vmatpush.msra.mxu0 %v622
        %638 = vmatpush.msra.mxu0 %v327
        %639 = vmatpush.msra.mxu0 %v325
        %640 = vmatpush.msra.mxu0 %v323
        %641 = vmatpush.msra.mxu0 %v321
        %642 = vmatpush.msra.mxu0 %v319
        %643 = vmatmul.f32.gmra.mxu0 %v525
        %v644 = vpop.f32.mrf.mxu0
        %v645 = vadd.f32 %v366, %v644
        %646 = vmatmul.f32.gmra.mxu0 %v528
        %v647 = vpop.f32.mrf.mxu0
        %v648 = vadd.f32 %v371, %v647
        %649 = vmatmul.f32.gmra.mxu0 %v531
        %v650 = vpop.f32.mrf.mxu0
        %v651 = vadd.f32 %v376, %v650
        %652 = vmatmul.f32.gmra.mxu0 %v534
        %v653 = vpop.f32.mrf.mxu0
        %v654 = vadd.f32 %v381, %v653
        %655 = vmatmul.f32.gmra.mxu0 %v537
        %v656 = vpop.f32.mrf.mxu0
        %v657 = vadd.f32 %v386, %v656
        %658 = vmatmul.f32.gmra.mxu0 %v540
        %v659 = vpop.f32.mrf.mxu0
        %v660 = vadd.f32 %v391, %v659
        %661 = vmatmul.f32.gmra.mxu0 %v543
        %v662 = vpop.f32.mrf.mxu0
        %v663 = vadd.f32 %v396, %v662
        %664 = vmatmul.f32.gmra.mxu0 %v546
        %v665 = vpop.f32.mrf.mxu0
        %v666 = vadd.f32 %v401, %v665
        %667 = vmatmul.f32.gmra.mxu0 %v549
        %v668 = vpop.f32.mrf.mxu0
        %v669 = vadd.f32 %v406, %v668
        %670 = vmatmul.f32.gmra.mxu0 %v552
        %v671 = vpop.f32.mrf.mxu0
        %v672 = vadd.f32 %v411, %v671
        %673 = vmatmul.f32.gmra.mxu0 %v555
        %v674 = vpop.f32.mrf.mxu0
        %v675 = vadd.f32 %v416, %v674
        %676 = vmatmul.f32.gmra.mxu0 %v558
        %v677 = vpop.f32.mrf.mxu0
        %v678 = vadd.f32 %v421, %v677
        %679 = vmatmul.f32.gmra.mxu0 %v561
        %v680 = vpop.f32.mrf.mxu0
        %v681 = vadd.f32 %v426, %v680
        %682 = vmatmul.f32.gmra.mxu0 %v564
        %v683 = vpop.f32.mrf.mxu0
        %v684 = vadd.f32 %v431, %v683
        %685 = vmatmul.f32.gmra.mxu0 %v567
        %v686 = vpop.f32.mrf.mxu0
        %v687 = vadd.f32 %v436, %v686
        %688 = vmatmul.f32.gmra.mxu0 %v570
        %v689 = vpop.f32.mrf.mxu0
        %v690 = vadd.f32 %v441, %v689
        %691 = vmatmul.f32.gmra.mxu0 %v573
        %v692 = vpop.f32.mrf.mxu0
        %v693 = vadd.f32 %v446, %v692
        %694 = vmatmul.f32.gmra.mxu0 %v576
        %v695 = vpop.f32.mrf.mxu0
        %v696 = vadd.f32 %v451, %v695
        %697 = vmatmul.f32.gmra.mxu0 %v579
        %v698 = vpop.f32.mrf.mxu0
        %v699 = vadd.f32 %v456, %v698
        %700 = vmatmul.f32.gmra.mxu0 %v582
        %v701 = vpop.f32.mrf.mxu0
        %v702 = vadd.f32 %v461, %v701
        %703 = vmatmul.f32.gmra.mxu0 %v585
        %v704 = vpop.f32.mrf.mxu0
        %v705 = vadd.f32 %v466, %v704
        %706 = vmatmul.f32.gmra.mxu0 %v588
        %v707 = vpop.f32.mrf.mxu0
        %v708 = vadd.f32 %v471, %v707
        %709 = vmatmul.f32.gmra.mxu0 %v591
        %v710 = vpop.f32.mrf.mxu0
        %v711 = vadd.f32 %v476, %v710
        %712 = vmatmul.f32.gmra.mxu0 %v594
        %v713 = vpop.f32.mrf.mxu0
        %v714 = vadd.f32 %v481, %v713
        %715 = vmatmul.f32.gmra.mxu0 %v597
        %v716 = vpop.f32.mrf.mxu0
        %v717 = vadd.f32 %v486, %v716
        %718 = vmatmul.f32.gmra.mxu0 %v600
        %v719 = vpop.f32.mrf.mxu0
        %v720 = vadd.f32 %v491, %v719
        %721 = vmatmul.f32.gmra.mxu0 %v603
        %v722 = vpop.f32.mrf.mxu0
        %v723 = vadd.f32 %v496, %v722
        %724 = vmatmul.f32.gmra.mxu0 %v606
        %v725 = vpop.f32.mrf.mxu0
        %v726 = vadd.f32 %v501, %v725
        %727 = vmatmul.f32.gmra.mxu0 %v609
        %v728 = vpop.f32.mrf.mxu0
        %v729 = vadd.f32 %v506, %v728
        %730 = vmatmul.f32.gmra.mxu0 %v612
        %v731 = vpop.f32.mrf.mxu0
        %v732 = vadd.f32 %v511, %v731
        %733 = vmatmul.f32.gmra.mxu0 %v615
        %v734 = vpop.f32.mrf.mxu0
        %v735 = vadd.f32 %v516, %v734
        %736 = vmatmul.f32.gmra.mxu0 %v618
        %v737 = vpop.f32.mrf.mxu0
        %v738 = vadd.f32 %v521, %v737
        %739 = vdwg.mxu0
        %740 = vmatpush.msra.mxu0 0.0
        %741 = vmatpush.msra.mxu0 0.0
        %742 = vmatpush.msra.mxu0 0.0
        %743 = vmatpush.msra.mxu0 0.0
        %744 = vmatpush.msra.mxu0 0.0
        %745 = vmatpush.msra.mxu0 0.0
        %746 = vmatpush.msra.mxu0 0.0
        %747 = vmatpush.msra.mxu0 0.0
        %748 = vmatpush.msra.mxu0 0.0
        %749 = vmatpush.msra.mxu0 0.0
        %750 = vmatpush.msra.mxu0 %v625
        %751 = vmatpush.msra.mxu0 %v328
        %752 = vmatpush.msra.mxu0 %v326
        %753 = vmatpush.msra.mxu0 %v324
        %754 = vmatpush.msra.mxu0 %v322
        %755 = vmatpush.msra.mxu0 %v320
        %756 = vmatmul.f32.gmra.mxu0 %v525
        %v757 = vpop.f32.mrf.mxu0
        %v758 = vadd.f32 %v366, %v757
        %759 = vmatmul.f32.gmra.mxu0 %v528
        %v760 = vpop.f32.mrf.mxu0
        %v761 = vadd.f32 %v371, %v760
        %762 = vmatmul.f32.gmra.mxu0 %v531
        %v763 = vpop.f32.mrf.mxu0
        %v764 = vadd.f32 %v376, %v763
        %765 = vmatmul.f32.gmra.mxu0 %v534
        %v766 = vpop.f32.mrf.mxu0
        %v767 = vadd.f32 %v381, %v766
        %768 = vmatmul.f32.gmra.mxu0 %v537
        %v769 = vpop.f32.mrf.mxu0
        %v770 = vadd.f32 %v386, %v769
        %771 = vmatmul.f32.gmra.mxu0 %v540
        %v772 = vpop.f32.mrf.mxu0
        %v773 = vadd.f32 %v391, %v772
        %774 = vmatmul.f32.gmra.mxu0 %v543
        %v775 = vpop.f32.mrf.mxu0
        %v776 = vadd.f32 %v396, %v775
        %777 = vmatmul.f32.gmra.mxu0 %v546
        %v778 = vpop.f32.mrf.mxu0
        %v779 = vadd.f32 %v401, %v778
        %780 = vmatmul.f32.gmra.mxu0 %v549
        %v781 = vpop.f32.mrf.mxu0
        %v782 = vadd.f32 %v406, %v781
        %783 = vmatmul.f32.gmra.mxu0 %v552
        %v784 = vpop.f32.mrf.mxu0
        %v785 = vadd.f32 %v411, %v784
        %786 = vmatmul.f32.gmra.mxu0 %v555
        %v787 = vpop.f32.mrf.mxu0
        %v788 = vadd.f32 %v416, %v787
        %789 = vmatmul.f32.gmra.mxu0 %v558
        %v790 = vpop.f32.mrf.mxu0
        %v791 = vadd.f32 %v421, %v790
        %792 = vmatmul.f32.gmra.mxu0 %v561
        %v793 = vpop.f32.mrf.mxu0
        %v794 = vadd.f32 %v426, %v793
        %795 = vmatmul.f32.gmra.mxu0 %v564
        %v796 = vpop.f32.mrf.mxu0
        %v797 = vadd.f32 %v431, %v796
        %798 = vmatmul.f32.gmra.mxu0 %v567
        %v799 = vpop.f32.mrf.mxu0
        %v800 = vadd.f32 %v436, %v799
        %801 = vmatmul.f32.gmra.mxu0 %v570
        %v802 = vpop.f32.mrf.mxu0
        %v803 = vadd.f32 %v441, %v802
        %804 = vmatmul.f32.gmra.mxu0 %v573
        %v805 = vpop.f32.mrf.mxu0
        %v806 = vadd.f32 %v446, %v805
        %807 = vmatmul.f32.gmra.mxu0 %v576
        %v808 = vpop.f32.mrf.mxu0
        %v809 = vadd.f32 %v451, %v808
        %810 = vmatmul.f32.gmra.mxu0 %v579
        %v811 = vpop.f32.mrf.mxu0
        %v812 = vadd.f32 %v456, %v811
        %813 = vmatmul.f32.gmra.mxu0 %v582
        %v814 = vpop.f32.mrf.mxu0
        %v815 = vadd.f32 %v461, %v814
        %816 = vmatmul.f32.gmra.mxu0 %v585
        %v817 = vpop.f32.mrf.mxu0
        %v818 = vadd.f32 %v466, %v817
        %819 = vmatmul.f32.gmra.mxu0 %v588
        %v820 = vpop.f32.mrf.mxu0
        %v821 = vadd.f32 %v471, %v820
        %822 = vmatmul.f32.gmra.mxu0 %v591
        %v823 = vpop.f32.mrf.mxu0
        %v824 = vadd.f32 %v476, %v823
        %825 = vmatmul.f32.gmra.mxu0 %v594
        %v826 = vpop.f32.mrf.mxu0
        %v827 = vadd.f32 %v481, %v826
        %828 = vmatmul.f32.gmra.mxu0 %v597
        %v829 = vpop.f32.mrf.mxu0
        %v830 = vadd.f32 %v486, %v829
        %831 = vmatmul.f32.gmra.mxu0 %v600
        %v832 = vpop.f32.mrf.mxu0
        %v833 = vadd.f32 %v491, %v832
        %834 = vmatmul.f32.gmra.mxu0 %v603
        %v835 = vpop.f32.mrf.mxu0
        %v836 = vadd.f32 %v496, %v835
        %837 = vmatmul.f32.gmra.mxu0 %v606
        %v838 = vpop.f32.mrf.mxu0
        %v839 = vadd.f32 %v501, %v838
        %840 = vmatmul.f32.gmra.mxu0 %v609
        %v841 = vpop.f32.mrf.mxu0
        %v842 = vadd.f32 %v506, %v841
        %843 = vmatmul.f32.gmra.mxu0 %v612
        %v844 = vpop.f32.mrf.mxu0
        %v845 = vadd.f32 %v511, %v844
        %846 = vmatmul.f32.gmra.mxu0 %v615
        %v847 = vpop.f32.mrf.mxu0
        %v848 = vadd.f32 %v516, %v847
        %849 = vmatmul.f32.gmra.mxu0 %v618
        %v850 = vpop.f32.mrf.mxu0
        %v851 = vadd.f32 %v521, %v850
        %852 = vdwg.mxu0
        %v853 = vtanh.pop %v693
        %v854 = vtanh.pop %v806
        %v855 = vtanh.pop %v696
        %v856 = vtanh.pop %v809
        %v857 = vtanh.pop %v699
        %v858 = vtanh.pop %v812
        %v859 = vtanh.pop %v702
        %v860 = vtanh.pop %v815
        %v861 = vtanh.pop %v705
        %v862 = vtanh.pop %v818
        %v863 = vtanh.pop %v708
        %v864 = vtanh.pop %v821
        %v865 = vtanh.pop %v711
        %v866 = vtanh.pop %v824
        %v867 = vtanh.pop %v714
        %v868 = vtanh.pop %v827
        %v869 = vtanh.pop %v717
        %v870 = vtanh.pop %v830
        %v871 = vtanh.pop %v720
        %v872 = vtanh.pop %v833
        %v873 = vtanh.pop %v723
        %v874 = vtanh.pop %v836
        %v875 = vtanh.pop %v726
        %v876 = vtanh.pop %v839
        %v877 = vtanh.pop %v729
        %v878 = vtanh.pop %v842
        %v879 = vtanh.pop %v732
        %v880 = vtanh.pop %v845
        %v881 = vtanh.pop %v735
        %v882 = vtanh.pop %v848
        %v883 = vtanh.pop %v738
        %v884 = vtanh.pop %v851
        %v885 = vadd.f32 %v645, %v853
        %v886 = vadd.f32 %v758, %v854
        %v887 = vadd.f32 %v648, %v855
        %v888 = vadd.f32 %v761, %v856
        %v889 = vadd.f32 %v651, %v857
        %v890 = vadd.f32 %v764, %v858
        %v891 = vadd.f32 %v654, %v859
        %v892 = vadd.f32 %v767, %v860
        %v893 = vadd.f32 %v657, %v861
        %v894 = vadd.f32 %v770, %v862
        %v895 = vadd.f32 %v660, %v863
        %v896 = vadd.f32 %v773, %v864
        %v897 = vadd.f32 %v663, %v865
        %v898 = vadd.f32 %v776, %v866
        %v899 = vadd.f32 %v666, %v867
        %v900 = vadd.f32 %v779, %v868
        %v901 = vadd.f32 %v669, %v869
        %v902 = vadd.f32 %v782, %v870
        %v903 = vadd.f32 %v672, %v871
        %v904 = vadd.f32 %v785, %v872
        %v905 = vadd.f32 %v675, %v873
        %v906 = vadd.f32 %v788, %v874
        %v907 = vadd.f32 %v678, %v875
        %v908 = vadd.f32 %v791, %v876
        %v909 = vadd.f32 %v681, %v877
        %v910 = vadd.f32 %v794, %v878
        %v911 = vadd.f32 %v684, %v879
        %v912 = vadd.f32 %v797, %v880
        %v913 = vadd.f32 %v687, %v881
        %v914 = vadd.f32 %v800, %v882
        %v915 = vadd.f32 %v690, %v883
        %v916 = vadd.f32 %v803, %v884
        %v917 = vld [vmem:[%s5] sm:$0xff]
        %v918 = vld [vmem:[%s5 + $0x8] sm:$0xff]
        %v919 = vld [vmem:[%s5 + $0x10] sm:$0xff]
        %v920 = vld [vmem:[%s5 + $0x18] sm:$0xff]
        %v921 = vld [vmem:[%s5 + $0x20] sm:$0xff]
        %v922 = vld [vmem:[%s5 + $0x28] sm:$0xff]
        %v923 = vld [vmem:[%s5 + $0x30] sm:$0xff]
        %v924 = vld [vmem:[%s5 + $0x38] sm:$0xff]
        %v925 = vld [vmem:[%s5 + $0x40] sm:$0xff]
        %v926 = vld [vmem:[%s5 + $0x48] sm:$0xff]
        %v927 = vld [vmem:[%s5 + $0x50] sm:$0xff]
        %v928 = vld [vmem:[%s5 + $0x58] sm:$0xff]
        %v929 = vld [vmem:[%s5 + $0x60] sm:$0xff]
        %v930 = vld [vmem:[%s5 + $0x68] sm:$0xff]
        %v931 = vld [vmem:[%s5 + $0x70] sm:$0xff]
        %v932 = vld [vmem:[%s5 + $0x78] sm:$0xff]
        %v933 = vld [vmem:[%s5 + $0x80] sm:$0xff]
        %v934 = vld [vmem:[%s5 + $0x88] sm:$0xff]
        %v935 = vld [vmem:[%s5 + $0x90] sm:$0xff]
        %v936 = vld [vmem:[%s5 + $0x98] sm:$0xff]
        %v937 = vld [vmem:[%s5 + $0xa0] sm:$0xff]
        %v938 = vld [vmem:[%s5 + $0xa8] sm:$0xff]
        %v939 = vld [vmem:[%s5 + $0xb0] sm:$0xff]
        %v940 = vld [vmem:[%s5 + $0xb8] sm:$0xff]
        %v941 = vld [vmem:[%s5 + $0xc0] sm:$0xff]
        %v942 = vld [vmem:[%s5 + $0xc8] sm:$0xff]
        %v943 = vld [vmem:[%s5 + $0xd0] sm:$0xff]
        %v944 = vld [vmem:[%s5 + $0xd8] sm:$0xff]
        %v945 = vld [vmem:[%s5 + $0xe0] sm:$0xff]
        %v946 = vld [vmem:[%s5 + $0xe8] sm:$0xff]
        %v947 = vld [vmem:[%s5 + $0xf0] sm:$0xff]
        %v948 = vld [vmem:[%s5 + $0xf8] sm:$0xff]
        %v949 = vld [vmem:[%s5 + $0x100] sm:$0x1]
        %v950 = vld [vmem:[%s3] sm:$0xff]
        %v951 = vld [vmem:[%s3 + $0x8] sm:$0xff]
        %v952 = vld [vmem:[%s3 + $0x10] sm:$0xff]
        %v953 = vld [vmem:[%s3 + $0x18] sm:$0xff]
        %v954 = vld [vmem:[%s3 + $0x20] sm:$0xff]
        %v955 = vld [vmem:[%s3 + $0x28] sm:$0xff]
        %v956 = vld [vmem:[%s3 + $0x30] sm:$0xff]
        %v957 = vld [vmem:[%s3 + $0x38] sm:$0xff]
        %v958 = vld [vmem:[%s3 + $0x40] sm:$0xff]
        %v959 = vld [vmem:[%s3 + $0x48] sm:$0xff]
        %v960 = vld [vmem:[%s3 + $0x50] sm:$0xff]
        %v961 = vld [vmem:[%s3 + $0x58] sm:$0xff]
        %v962 = vld [vmem:[%s3 + $0x60] sm:$0xff]
        %v963 = vld [vmem:[%s3 + $0x68] sm:$0xff]
        %v964 = vld [vmem:[%s3 + $0x70] sm:$0xff]
        %v965 = vld [vmem:[%s3 + $0x78] sm:$0xff]
        %967 = vset.pattern.permute.xlu0 0
        %968 = vperm.xlu0 %967, %v917
        %v969 = vpop.permute.xlu0 %968
        %972 = vset.pattern.permute.xlu0 0
        %973 = vperm.xlu0 %972, %v918
        %v974 = vpop.permute.xlu0 %973
        %977 = vset.pattern.permute.xlu0 0
        %978 = vperm.xlu0 %977, %v919
        %v979 = vpop.permute.xlu0 %978
        %982 = vset.pattern.permute.xlu0 0
        %983 = vperm.xlu0 %982, %v920
        %v984 = vpop.permute.xlu0 %983
        %987 = vset.pattern.permute.xlu0 0
        %988 = vperm.xlu0 %987, %v921
        %v989 = vpop.permute.xlu0 %988
        %992 = vset.pattern.permute.xlu0 0
        %993 = vperm.xlu0 %992, %v922
        %v994 = vpop.permute.xlu0 %993
        %997 = vset.pattern.permute.xlu0 0
        %998 = vperm.xlu0 %997, %v923
        %v999 = vpop.permute.xlu0 %998
        %1002 = vset.pattern.permute.xlu0 0
        %1003 = vperm.xlu0 %1002, %v924
        %v1004 = vpop.permute.xlu0 %1003
        %1007 = vset.pattern.permute.xlu0 0
        %1008 = vperm.xlu0 %1007, %v925
        %v1009 = vpop.permute.xlu0 %1008
        %1012 = vset.pattern.permute.xlu0 0
        %1013 = vperm.xlu0 %1012, %v926
        %v1014 = vpop.permute.xlu0 %1013
        %1017 = vset.pattern.permute.xlu0 0
        %1018 = vperm.xlu0 %1017, %v927
        %v1019 = vpop.permute.xlu0 %1018
        %1022 = vset.pattern.permute.xlu0 0
        %1023 = vperm.xlu0 %1022, %v928
        %v1024 = vpop.permute.xlu0 %1023
        %1027 = vset.pattern.permute.xlu0 0
        %1028 = vperm.xlu0 %1027, %v929
        %v1029 = vpop.permute.xlu0 %1028
        %1032 = vset.pattern.permute.xlu0 0
        %1033 = vperm.xlu0 %1032, %v930
        %v1034 = vpop.permute.xlu0 %1033
        %1037 = vset.pattern.permute.xlu0 0
        %1038 = vperm.xlu0 %1037, %v931
        %v1039 = vpop.permute.xlu0 %1038
        %1042 = vset.pattern.permute.xlu0 0
        %1043 = vperm.xlu0 %1042, %v932
        %v1044 = vpop.permute.xlu0 %1043
        %1046 = vmatpush.msra.mxu0 %v915
        %1047 = vmatpush.msra.mxu0 %v913
        %1048 = vmatpush.msra.mxu0 %v911
        %1049 = vmatpush.msra.mxu0 %v909
        %1050 = vmatpush.msra.mxu0 %v907
        %1051 = vmatpush.msra.mxu0 %v905
        %1052 = vmatpush.msra.mxu0 %v903
        %1053 = vmatpush.msra.mxu0 %v901
        %1054 = vmatpush.msra.mxu0 %v899
        %1055 = vmatpush.msra.mxu0 %v897
        %1056 = vmatpush.msra.mxu0 %v895
        %1057 = vmatpush.msra.mxu0 %v893
        %1058 = vmatpush.msra.mxu0 %v891
        %1059 = vmatpush.msra.mxu0 %v889
        %1060 = vmatpush.msra.mxu0 %v887
        %1061 = vmatpush.msra.mxu0 %v885
        %1062 = vmatmul.f32.gmra.mxu0 %v950
        %v1063 = vpop.f32.mrf.mxu0
        %v1064 = vadd.f32 %v969, %v1063
        %1065 = vmatmul.f32.gmra.mxu0 %v951
        %v1066 = vpop.f32.mrf.mxu0
        %v1067 = vadd.f32 %v974, %v1066
        %1068 = vmatmul.f32.gmra.mxu0 %v952
        %v1069 = vpop.f32.mrf.mxu0
        %v1070 = vadd.f32 %v979, %v1069
        %1071 = vmatmul.f32.gmra.mxu0 %v953
        %v1072 = vpop.f32.mrf.mxu0
        %v1073 = vadd.f32 %v984, %v1072
        %1074 = vmatmul.f32.gmra.mxu0 %v954
        %v1075 = vpop.f32.mrf.mxu0
        %v1076 = vadd.f32 %v989, %v1075
        %1077 = vmatmul.f32.gmra.mxu0 %v955
        %v1078 = vpop.f32.mrf.mxu0
        %v1079 = vadd.f32 %v994, %v1078
        %1080 = vmatmul.f32.gmra.mxu0 %v956
        %v1081 = vpop.f32.mrf.mxu0
        %v1082 = vadd.f32 %v999, %v1081
        %1083 = vmatmul.f32.gmra.mxu0 %v957
        %v1084 = vpop.f32.mrf.mxu0
        %v1085 = vadd.f32 %v1004, %v1084
        %1086 = vmatmul.f32.gmra.mxu0 %v958
        %v1087 = vpop.f32.mrf.mxu0
        %v1088 = vadd.f32 %v1009, %v1087
        %1089 = vmatmul.f32.gmra.mxu0 %v959
        %v1090 = vpop.f32.mrf.mxu0
        %v1091 = vadd.f32 %v1014, %v1090
        %1092 = vmatmul.f32.gmra.mxu0 %v960
        %v1093 = vpop.f32.mrf.mxu0
        %v1094 = vadd.f32 %v1019, %v1093
        %1095 = vmatmul.f32.gmra.mxu0 %v961
        %v1096 = vpop.f32.mrf.mxu0
        %v1097 = vadd.f32 %v1024, %v1096
        %1098 = vmatmul.f32.gmra.mxu0 %v962
        %v1099 = vpop.f32.mrf.mxu0
        %v1100 = vadd.f32 %v1029, %v1099
        %1101 = vmatmul.f32.gmra.mxu0 %v963
        %v1102 = vpop.f32.mrf.mxu0
        %v1103 = vadd.f32 %v1034, %v1102
        %1104 = vmatmul.f32.gmra.mxu0 %v964
        %v1105 = vpop.f32.mrf.mxu0
        %v1106 = vadd.f32 %v1039, %v1105
        %1107 = vmatmul.f32.gmra.mxu0 %v965
        %v1108 = vpop.f32.mrf.mxu0
        %v1109 = vadd.f32 %v1044, %v1108
        %1110 = vdwg.mxu0
        %1111 = vmatpush.msra.mxu0 %v916
        %1112 = vmatpush.msra.mxu0 %v914
        %1113 = vmatpush.msra.mxu0 %v912
        %1114 = vmatpush.msra.mxu0 %v910
        %1115 = vmatpush.msra.mxu0 %v908
        %1116 = vmatpush.msra.mxu0 %v906
        %1117 = vmatpush.msra.mxu0 %v904
        %1118 = vmatpush.msra.mxu0 %v902
        %1119 = vmatpush.msra.mxu0 %v900
        %1120 = vmatpush.msra.mxu0 %v898
        %1121 = vmatpush.msra.mxu0 %v896
        %1122 = vmatpush.msra.mxu0 %v894
        %1123 = vmatpush.msra.mxu0 %v892
        %1124 = vmatpush.msra.mxu0 %v890
        %1125 = vmatpush.msra.mxu0 %v888
        %1126 = vmatpush.msra.mxu0 %v886
        %1127 = vmatmul.f32.gmra.mxu0 %v950
        %v1128 = vpop.f32.mrf.mxu0
        %v1129 = vadd.f32 %v969, %v1128
        %1130 = vmatmul.f32.gmra.mxu0 %v951
        %v1131 = vpop.f32.mrf.mxu0
        %v1132 = vadd.f32 %v974, %v1131
        %1133 = vmatmul.f32.gmra.mxu0 %v952
        %v1134 = vpop.f32.mrf.mxu0
        %v1135 = vadd.f32 %v979, %v1134
        %1136 = vmatmul.f32.gmra.mxu0 %v953
        %v1137 = vpop.f32.mrf.mxu0
        %v1138 = vadd.f32 %v984, %v1137
        %1139 = vmatmul.f32.gmra.mxu0 %v954
        %v1140 = vpop.f32.mrf.mxu0
        %v1141 = vadd.f32 %v989, %v1140
        %1142 = vmatmul.f32.gmra.mxu0 %v955
        %v1143 = vpop.f32.mrf.mxu0
        %v1144 = vadd.f32 %v994, %v1143
        %1145 = vmatmul.f32.gmra.mxu0 %v956
        %v1146 = vpop.f32.mrf.mxu0
        %v1147 = vadd.f32 %v999, %v1146
        %1148 = vmatmul.f32.gmra.mxu0 %v957
        %v1149 = vpop.f32.mrf.mxu0
        %v1150 = vadd.f32 %v1004, %v1149
        %1151 = vmatmul.f32.gmra.mxu0 %v958
        %v1152 = vpop.f32.mrf.mxu0
        %v1153 = vadd.f32 %v1009, %v1152
        %1154 = vmatmul.f32.gmra.mxu0 %v959
        %v1155 = vpop.f32.mrf.mxu0
        %v1156 = vadd.f32 %v1014, %v1155
        %1157 = vmatmul.f32.gmra.mxu0 %v960
        %v1158 = vpop.f32.mrf.mxu0
        %v1159 = vadd.f32 %v1019, %v1158
        %1160 = vmatmul.f32.gmra.mxu0 %v961
        %v1161 = vpop.f32.mrf.mxu0
        %v1162 = vadd.f32 %v1024, %v1161
        %1163 = vmatmul.f32.gmra.mxu0 %v962
        %v1164 = vpop.f32.mrf.mxu0
        %v1165 = vadd.f32 %v1029, %v1164
        %1166 = vmatmul.f32.gmra.mxu0 %v963
        %v1167 = vpop.f32.mrf.mxu0
        %v1168 = vadd.f32 %v1034, %v1167
        %1169 = vmatmul.f32.gmra.mxu0 %v964
        %v1170 = vpop.f32.mrf.mxu0
        %v1171 = vadd.f32 %v1039, %v1170
        %1172 = vmatmul.f32.gmra.mxu0 %v965
        %v1173 = vpop.f32.mrf.mxu0
        %v1174 = vadd.f32 %v1044, %v1173
        %1175 = vdwg.mxu0
        %v1176 = vtanh.pop %v1064
        %v1177 = vtanh.pop %v1129
        %v1178 = vtanh.pop %v1067
        %v1179 = vtanh.pop %v1132
        %v1180 = vtanh.pop %v1070
        %v1181 = vtanh.pop %v1135
        %v1182 = vtanh.pop %v1073
        %v1183 = vtanh.pop %v1138
        %v1184 = vtanh.pop %v1076
        %v1185 = vtanh.pop %v1141
        %v1186 = vtanh.pop %v1079
        %v1187 = vtanh.pop %v1144
        %v1188 = vtanh.pop %v1082
        %v1189 = vtanh.pop %v1147
        %v1190 = vtanh.pop %v1085
        %v1191 = vtanh.pop %v1150
        %v1192 = vtanh.pop %v1088
        %v1193 = vtanh.pop %v1153
        %v1194 = vtanh.pop %v1091
        %v1195 = vtanh.pop %v1156
        %v1196 = vtanh.pop %v1094
        %v1197 = vtanh.pop %v1159
        %v1198 = vtanh.pop %v1097
        %v1199 = vtanh.pop %v1162
        %v1200 = vtanh.pop %v1100
        %v1201 = vtanh.pop %v1165
        %v1202 = vtanh.pop %v1103
        %v1203 = vtanh.pop %v1168
        %v1204 = vtanh.pop %v1106
        %v1205 = vtanh.pop %v1171
        %v1206 = vtanh.pop %v1109
        %v1207 = vtanh.pop %v1174
        %v1208 = vadd.f32 %v885, %v1176
        %v1209 = vadd.f32 %v886, %v1177
        %v1210 = vadd.f32 %v887, %v1178
        %v1211 = vadd.f32 %v888, %v1179
        %v1212 = vadd.f32 %v889, %v1180
        %v1213 = vadd.f32 %v890, %v1181
        %v1214 = vadd.f32 %v891, %v1182
        %v1215 = vadd.f32 %v892, %v1183
        %v1216 = vadd.f32 %v893, %v1184
        %v1217 = vadd.f32 %v894, %v1185
        %v1218 = vadd.f32 %v895, %v1186
        %v1219 = vadd.f32 %v896, %v1187
        %v1220 = vadd.f32 %v897, %v1188
        %v1221 = vadd.f32 %v898, %v1189
        %v1222 = vadd.f32 %v899, %v1190
        %v1223 = vadd.f32 %v900, %v1191
        %v1224 = vadd.f32 %v901, %v1192
        %v1225 = vadd.f32 %v902, %v1193
        %v1226 = vadd.f32 %v903, %v1194
        %v1227 = vadd.f32 %v904, %v1195
        %v1228 = vadd.f32 %v905, %v1196
        %v1229 = vadd.f32 %v906, %v1197
        %v1230 = vadd.f32 %v907, %v1198
        %v1231 = vadd.f32 %v908, %v1199
        %v1232 = vadd.f32 %v909, %v1200
        %v1233 = vadd.f32 %v910, %v1201
        %v1234 = vadd.f32 %v911, %v1202
        %v1235 = vadd.f32 %v912, %v1203
        %v1236 = vadd.f32 %v913, %v1204
        %v1237 = vadd.f32 %v914, %v1205
        %v1238 = vadd.f32 %v915, %v1206
        %v1239 = vadd.f32 %v916, %v1207
        %v1240 = vld [vmem:[%s3 + $0x80] sm:$0xff]
        %v1241 = vld [vmem:[%s3 + $0x88] sm:$0xff]
        %v1242 = vld [vmem:[%s3 + $0x90] sm:$0xff]
        %v1243 = vld [vmem:[%s3 + $0x98] sm:$0xff]
        %v1244 = vld [vmem:[%s3 + $0xa0] sm:$0xff]
        %v1245 = vld [vmem:[%s3 + $0xa8] sm:$0xff]
        %v1246 = vld [vmem:[%s3 + $0xb0] sm:$0xff]
        %v1247 = vld [vmem:[%s3 + $0xb8] sm:$0xff]
        %v1248 = vld [vmem:[%s3 + $0xc0] sm:$0xff]
        %v1249 = vld [vmem:[%s3 + $0xc8] sm:$0xff]
        %v1250 = vld [vmem:[%s3 + $0xd0] sm:$0xff]
        %v1251 = vld [vmem:[%s3 + $0xd8] sm:$0xff]
        %v1252 = vld [vmem:[%s3 + $0xe0] sm:$0xff]
        %v1253 = vld [vmem:[%s3 + $0xe8] sm:$0xff]
        %v1254 = vld [vmem:[%s3 + $0xf0] sm:$0xff]
        %v1255 = vld [vmem:[%s3 + $0xf8] sm:$0xff]
        %1257 = vset.pattern.permute.xlu0 0
        %1258 = vperm.xlu0 %1257, %v933
        %v1259 = vpop.permute.xlu0 %1258
        %1262 = vset.pattern.permute.xlu0 0
        %1263 = vperm.xlu0 %1262, %v934
        %v1264 = vpop.permute.xlu0 %1263
        %1267 = vset.pattern.permute.xlu0 0
        %1268 = vperm.xlu0 %1267, %v935
        %v1269 = vpop.permute.xlu0 %1268
        %1272 = vset.pattern.permute.xlu0 0
        %1273 = vperm.xlu0 %1272, %v936
        %v1274 = vpop.permute.xlu0 %1273
        %1277 = vset.pattern.permute.xlu0 0
        %1278 = vperm.xlu0 %1277, %v937
        %v1279 = vpop.permute.xlu0 %1278
        %1282 = vset.pattern.permute.xlu0 0
        %1283 = vperm.xlu0 %1282, %v938
        %v1284 = vpop.permute.xlu0 %1283
        %1287 = vset.pattern.permute.xlu0 0
        %1288 = vperm.xlu0 %1287, %v939
        %v1289 = vpop.permute.xlu0 %1288
        %1292 = vset.pattern.permute.xlu0 0
        %1293 = vperm.xlu0 %1292, %v940
        %v1294 = vpop.permute.xlu0 %1293
        %1297 = vset.pattern.permute.xlu0 0
        %1298 = vperm.xlu0 %1297, %v941
        %v1299 = vpop.permute.xlu0 %1298
        %1302 = vset.pattern.permute.xlu0 0
        %1303 = vperm.xlu0 %1302, %v942
        %v1304 = vpop.permute.xlu0 %1303
        %1307 = vset.pattern.permute.xlu0 0
        %1308 = vperm.xlu0 %1307, %v943
        %v1309 = vpop.permute.xlu0 %1308
        %1312 = vset.pattern.permute.xlu0 0
        %1313 = vperm.xlu0 %1312, %v944
        %v1314 = vpop.permute.xlu0 %1313
        %1317 = vset.pattern.permute.xlu0 0
        %1318 = vperm.xlu0 %1317, %v945
        %v1319 = vpop.permute.xlu0 %1318
        %1322 = vset.pattern.permute.xlu0 0
        %1323 = vperm.xlu0 %1322, %v946
        %v1324 = vpop.permute.xlu0 %1323
        %1327 = vset.pattern.permute.xlu0 0
        %1328 = vperm.xlu0 %1327, %v947
        %v1329 = vpop.permute.xlu0 %1328
        %1332 = vset.pattern.permute.xlu0 0
        %1333 = vperm.xlu0 %1332, %v948
        %v1334 = vpop.permute.xlu0 %1333
        %1336 = vmatpush.msra.mxu0 %v1238
        %1337 = vmatpush.msra.mxu0 %v1236
        %1338 = vmatpush.msra.mxu0 %v1234
        %1339 = vmatpush.msra.mxu0 %v1232
        %1340 = vmatpush.msra.mxu0 %v1230
        %1341 = vmatpush.msra.mxu0 %v1228
        %1342 = vmatpush.msra.mxu0 %v1226
        %1343 = vmatpush.msra.mxu0 %v1224
        %1344 = vmatpush.msra.mxu0 %v1222
        %1345 = vmatpush.msra.mxu0 %v1220
        %1346 = vmatpush.msra.mxu0 %v1218
        %1347 = vmatpush.msra.mxu0 %v1216
        %1348 = vmatpush.msra.mxu0 %v1214
        %1349 = vmatpush.msra.mxu0 %v1212
        %1350 = vmatpush.msra.mxu0 %v1210
        %1351 = vmatpush.msra.mxu0 %v1208
        %1352 = vmatmul.f32.gmra.mxu0 %v1240
        %v1353 = vpop.f32.mrf.mxu0
        %v1354 = vadd.f32 %v1259, %v1353
        %1355 = vmatmul.f32.gmra.mxu0 %v1241
        %v1356 = vpop.f32.mrf.mxu0
        %v1357 = vadd.f32 %v1264, %v1356
        %1358 = vmatmul.f32.gmra.mxu0 %v1242
        %v1359 = vpop.f32.mrf.mxu0
        %v1360 = vadd.f32 %v1269, %v1359
        %1361 = vmatmul.f32.gmra.mxu0 %v1243
        %v1362 = vpop.f32.mrf.mxu0
        %v1363 = vadd.f32 %v1274, %v1362
        %1364 = vmatmul.f32.gmra.mxu0 %v1244
        %v1365 = vpop.f32.mrf.mxu0
        %v1366 = vadd.f32 %v1279, %v1365
        %1367 = vmatmul.f32.gmra.mxu0 %v1245
        %v1368 = vpop.f32.mrf.mxu0
        %v1369 = vadd.f32 %v1284, %v1368
        %1370 = vmatmul.f32.gmra.mxu0 %v1246
        %v1371 = vpop.f32.mrf.mxu0
        %v1372 = vadd.f32 %v1289, %v1371
        %1373 = vmatmul.f32.gmra.mxu0 %v1247
        %v1374 = vpop.f32.mrf.mxu0
        %v1375 = vadd.f32 %v1294, %v1374
        %1376 = vmatmul.f32.gmra.mxu0 %v1248
        %v1377 = vpop.f32.mrf.mxu0
        %v1378 = vadd.f32 %v1299, %v1377
        %1379 = vmatmul.f32.gmra.mxu0 %v1249
        %v1380 = vpop.f32.mrf.mxu0
        %v1381 = vadd.f32 %v1304, %v1380
        %1382 = vmatmul.f32.gmra.mxu0 %v1250
        %v1383 = vpop.f32.mrf.mxu0
        %v1384 = vadd.f32 %v1309, %v1383
        %1385 = vmatmul.f32.gmra.mxu0 %v1251
        %v1386 = vpop.f32.mrf.mxu0
        %v1387 = vadd.f32 %v1314, %v1386
        %1388 = vmatmul.f32.gmra.mxu0 %v1252
        %v1389 = vpop.f32.mrf.mxu0
        %v1390 = vadd.f32 %v1319, %v1389
        %1391 = vmatmul.f32.gmra.mxu0 %v1253
        %v1392 = vpop.f32.mrf.mxu0
        %v1393 = vadd.f32 %v1324, %v1392
        %1394 = vmatmul.f32.gmra.mxu0 %v1254
        %v1395 = vpop.f32.mrf.mxu0
        %v1396 = vadd.f32 %v1329, %v1395
        %1397 = vmatmul.f32.gmra.mxu0 %v1255
        %v1398 = vpop.f32.mrf.mxu0
        %v1399 = vadd.f32 %v1334, %v1398
        %1400 = vdwg.mxu0
        %1401 = vmatpush.msra.mxu0 %v1239
        %1402 = vmatpush.msra.mxu0 %v1237
        %1403 = vmatpush.msra.mxu0 %v1235
        %1404 = vmatpush.msra.mxu0 %v1233
        %1405 = vmatpush.msra.mxu0 %v1231
        %1406 = vmatpush.msra.mxu0 %v1229
        %1407 = vmatpush.msra.mxu0 %v1227
        %1408 = vmatpush.msra.mxu0 %v1225
        %1409 = vmatpush.msra.mxu0 %v1223
        %1410 = vmatpush.msra.mxu0 %v1221
        %1411 = vmatpush.msra.mxu0 %v1219
        %1412 = vmatpush.msra.mxu0 %v1217
        %1413 = vmatpush.msra.mxu0 %v1215
        %1414 = vmatpush.msra.mxu0 %v1213
        %1415 = vmatpush.msra.mxu0 %v1211
        %1416 = vmatpush.msra.mxu0 %v1209
        %1417 = vmatmul.f32.gmra.mxu0 %v1240
        %v1418 = vpop.f32.mrf.mxu0
        %v1419 = vadd.f32 %v1259, %v1418
        %1420 = vmatmul.f32.gmra.mxu0 %v1241
        %v1421 = vpop.f32.mrf.mxu0
        %v1422 = vadd.f32 %v1264, %v1421
        %1423 = vmatmul.f32.gmra.mxu0 %v1242
        %v1424 = vpop.f32.mrf.mxu0
        %v1425 = vadd.f32 %v1269, %v1424
        %1426 = vmatmul.f32.gmra.mxu0 %v1243
        %v1427 = vpop.f32.mrf.mxu0
        %v1428 = vadd.f32 %v1274, %v1427
        %1429 = vmatmul.f32.gmra.mxu0 %v1244
        %v1430 = vpop.f32.mrf.mxu0
        %v1431 = vadd.f32 %v1279, %v1430
        %1432 = vmatmul.f32.gmra.mxu0 %v1245
        %v1433 = vpop.f32.mrf.mxu0
        %v1434 = vadd.f32 %v1284, %v1433
        %1435 = vmatmul.f32.gmra.mxu0 %v1246
        %v1436 = vpop.f32.mrf.mxu0
        %v1437 = vadd.f32 %v1289, %v1436
        %1438 = vmatmul.f32.gmra.mxu0 %v1247
        %v1439 = vpop.f32.mrf.mxu0
        %v1440 = vadd.f32 %v1294, %v1439
        %1441 = vmatmul.f32.gmra.mxu0 %v1248
        %v1442 = vpop.f32.mrf.mxu0
        %v1443 = vadd.f32 %v1299, %v1442
        %1444 = vmatmul.f32.gmra.mxu0 %v1249
        %v1445 = vpop.f32.mrf.mxu0
        %v1446 = vadd.f32 %v1304, %v1445
        %1447 = vmatmul.f32.gmra.mxu0 %v1250
        %v1448 = vpop.f32.mrf.mxu0
        %v1449 = vadd.f32 %v1309, %v1448
        %1450 = vmatmul.f32.gmra.mxu0 %v1251
        %v1451 = vpop.f32.mrf.mxu0
        %v1452 = vadd.f32 %v1314, %v1451
        %1453 = vmatmul.f32.gmra.mxu0 %v1252
        %v1454 = vpop.f32.mrf.mxu0
        %v1455 = vadd.f32 %v1319, %v1454
        %1456 = vmatmul.f32.gmra.mxu0 %v1253
        %v1457 = vpop.f32.mrf.mxu0
        %v1458 = vadd.f32 %v1324, %v1457
        %1459 = vmatmul.f32.gmra.mxu0 %v1254
        %v1460 = vpop.f32.mrf.mxu0
        %v1461 = vadd.f32 %v1329, %v1460
        %1462 = vmatmul.f32.gmra.mxu0 %v1255
        %v1463 = vpop.f32.mrf.mxu0
        %v1464 = vadd.f32 %v1334, %v1463
        %1465 = vdwg.mxu0
        %v1466 = vtanh.pop %v1354
        %v1467 = vtanh.pop %v1419
        %v1468 = vtanh.pop %v1357
        %v1469 = vtanh.pop %v1422
        %v1470 = vtanh.pop %v1360
        %v1471 = vtanh.pop %v1425
        %v1472 = vtanh.pop %v1363
        %v1473 = vtanh.pop %v1428
        %v1474 = vtanh.pop %v1366
        %v1475 = vtanh.pop %v1431
        %v1476 = vtanh.pop %v1369
        %v1477 = vtanh.pop %v1434
        %v1478 = vtanh.pop %v1372
        %v1479 = vtanh.pop %v1437
        %v1480 = vtanh.pop %v1375
        %v1481 = vtanh.pop %v1440
        %v1482 = vtanh.pop %v1378
        %v1483 = vtanh.pop %v1443
        %v1484 = vtanh.pop %v1381
        %v1485 = vtanh.pop %v1446
        %v1486 = vtanh.pop %v1384
        %v1487 = vtanh.pop %v1449
        %v1488 = vtanh.pop %v1387
        %v1489 = vtanh.pop %v1452
        %v1490 = vtanh.pop %v1390
        %v1491 = vtanh.pop %v1455
        %v1492 = vtanh.pop %v1393
        %v1493 = vtanh.pop %v1458
        %v1494 = vtanh.pop %v1396
        %v1495 = vtanh.pop %v1461
        %v1496 = vtanh.pop %v1399
        %v1497 = vtanh.pop %v1464
        %v1498 = vadd.f32 %v1208, %v1466
        %v1499 = vadd.f32 %v1209, %v1467
        %v1500 = vadd.f32 %v1210, %v1468
        %v1501 = vadd.f32 %v1211, %v1469
        %v1502 = vadd.f32 %v1212, %v1470
        %v1503 = vadd.f32 %v1213, %v1471
        %v1504 = vadd.f32 %v1214, %v1472
        %v1505 = vadd.f32 %v1215, %v1473
        %v1506 = vadd.f32 %v1216, %v1474
        %v1507 = vadd.f32 %v1217, %v1475
        %v1508 = vadd.f32 %v1218, %v1476
        %v1509 = vadd.f32 %v1219, %v1477
        %v1510 = vadd.f32 %v1220, %v1478
        %v1511 = vadd.f32 %v1221, %v1479
        %v1512 = vadd.f32 %v1222, %v1480
        %v1513 = vadd.f32 %v1223, %v1481
        %v1514 = vadd.f32 %v1224, %v1482
        %v1515 = vadd.f32 %v1225, %v1483
        %v1516 = vadd.f32 %v1226, %v1484
        %v1517 = vadd.f32 %v1227, %v1485
        %v1518 = vadd.f32 %v1228, %v1486
        %v1519 = vadd.f32 %v1229, %v1487
        %v1520 = vadd.f32 %v1230, %v1488
        %v1521 = vadd.f32 %v1231, %v1489
        %v1522 = vadd.f32 %v1232, %v1490
        %v1523 = vadd.f32 %v1233, %v1491
        %v1524 = vadd.f32 %v1234, %v1492
        %v1525 = vadd.f32 %v1235, %v1493
        %v1526 = vadd.f32 %v1236, %v1494
        %v1527 = vadd.f32 %v1237, %v1495
        %v1528 = vadd.f32 %v1238, %v1496
        %v1529 = vadd.f32 %v1239, %v1497
        %v1530 = vld [vmem:[%s4] sm:$0x1]
        %1532 = vset.pattern.permute.xlu0 0
        %1533 = vperm.xlu0 %1532, %v949
        %v1534 = vpop.permute.xlu0 %1533
        %1536 = vmatpush.msra.mxu0 %v1528
        %1537 = vmatpush.msra.mxu0 %v1526
        %1538 = vmatpush.msra.mxu0 %v1524
        %1539 = vmatpush.msra.mxu0 %v1522
        %1540 = vmatpush.msra.mxu0 %v1520
        %1541 = vmatpush.msra.mxu0 %v1518
        %1542 = vmatpush.msra.mxu0 %v1516
        %1543 = vmatpush.msra.mxu0 %v1514
        %1544 = vmatpush.msra.mxu0 %v1512
        %1545 = vmatpush.msra.mxu0 %v1510
        %1546 = vmatpush.msra.mxu0 %v1508
        %1547 = vmatpush.msra.mxu0 %v1506
        %1548 = vmatpush.msra.mxu0 %v1504
        %1549 = vmatpush.msra.mxu0 %v1502
        %1550 = vmatpush.msra.mxu0 %v1500
        %1551 = vmatpush.msra.mxu0 %v1498
        %1552 = vmatmul.f32.gmra.mxu0 %v1530
        %v1553 = vpop.f32.mrf.mxu0
        %v1554 = vadd.f32 %v1534, %v1553
        %1555 = vdwg.mxu0
        %1556 = vmatpush.msra.mxu0 %v1529
        %1557 = vmatpush.msra.mxu0 %v1527
        %1558 = vmatpush.msra.mxu0 %v1525
        %1559 = vmatpush.msra.mxu0 %v1523
        %1560 = vmatpush.msra.mxu0 %v1521
        %1561 = vmatpush.msra.mxu0 %v1519
        %1562 = vmatpush.msra.mxu0 %v1517
        %1563 = vmatpush.msra.mxu0 %v1515
        %1564 = vmatpush.msra.mxu0 %v1513
        %1565 = vmatpush.msra.mxu0 %v1511
        %1566 = vmatpush.msra.mxu0 %v1509
        %1567 = vmatpush.msra.mxu0 %v1507
        %1568 = vmatpush.msra.mxu0 %v1505
        %1569 = vmatpush.msra.mxu0 %v1503
        %1570 = vmatpush.msra.mxu0 %v1501
        %1571 = vmatpush.msra.mxu0 %v1499
        %1572 = vmatmul.f32.gmra.mxu0 %v1530
        %v1573 = vpop.f32.mrf.mxu0
        %v1574 = vadd.f32 %v1534, %v1573
        %1575 = vdwg.mxu0
        %v1578 = vrot.slane %v1574, 7
        %vm1579 = vcmask 1040384
        %v1580 = vsel %vm1579, %v1554, %v1578
        %v1582 = vlaneseq
        %vm1583 = vcmp.ge.s32.totalorder %v1582, 0
        %vm1584 = vcmp.lt.s32.totalorder %v1582, 256
        %vm1585 = vmand %vm1583, %vm1584
        %1586 = vst.msk [vmem:[%s274] sm:$0x3] %vm1585, %v1580
        %s1587 = sand.u32 %s178, 1
        %s1588 = scalar_lea.sflag [#allocation3], %s1587
        %s1589 = sand.u32 %s178, 1
        %s1590 = smul.addr %s1589, 2
        %s1591 = scalar_lea.vmem [#allocation2], %s1590
        // Predicated region
        $region45: #{tpu_custom_call.1} parent=43 // pred_check
          %p1592 = pneg %p188
        $region46: #{tpu_custom_call.1} parent=43 // pred_check_branch
          %1594 = sbr.rel (%p1592) target = $region48
        $region47: #{tpu_custom_call.1} parent=43 // pred_region
          %s1595 = smul.u32 2, %s24
          %1597 = vsyncadd %s1588, 0
          %s1598 = smul.addr %s25, 2
          %s1599 = sadd.s32 %s1595, %s1598
          %s1600 = scalar_lea.hbm %s6, %s1599
          %s1602 = sshll.u32 %s1591, 4
          %s1603 = int_to_ptr.vmem [resolvable:$true] %s1602
          %s1604 = sshll.u32 %s1600, 4
          %s1605 = int_to_ptr.hbm [resolvable:$true] %s1604
          %1607 = dma.vmem_to_hbm [thread:$0]  %s1603, 32, %s1605, %s1588
        $region48: #{tpu_custom_call.1} parent=43 // pred_fallthru
          _
      $region44: #{tpu_custom_call.1} parent=5 // pred_fallthru
        _
      %p1608 = scmp.le.s32.totalorder 2, %s15
      // Predicated region
      $region49: #{tpu_custom_call.1} parent=5 // pred_check
        %p1609 = pneg %p1608
      $region50: #{tpu_custom_call.1} parent=5 // pred_check_branch
        %1611 = sbr.rel (%p1609) target = $region52
      $region51: #{tpu_custom_call.1} parent=5 // pred_region
        %s1612 = ssub.s32 %s15, 2
        // Predicated region
        $region53: #{tpu_custom_call.1} parent=51 // pred_check
          %p1613 = pneg %p194
        $region54: #{tpu_custom_call.1} parent=51 // pred_check_branch
          %1615 = sbr.rel (%p1613) target = $region56
        $region55: #{tpu_custom_call.1} parent=51 // pred_region
          %s1616 = sand.u32 %s179, 1
          %s1617 = scalar_lea.sflag [#allocation3], %s1616
          %s1618 = sand.u32 %s179, 1
          %s1619 = smul.addr %s1618, 2
          %s1620 = scalar_lea.vmem [#allocation2], %s1619
          %1622 = dma.done %s1617, 32
        $region56: #{tpu_custom_call.1} parent=51 // pred_fallthru
          _
      $region52: #{tpu_custom_call.1} parent=5 // pred_fallthru
        _
    $region6: #{tpu_custom_call.1} parent=1 // loop_footer
      %s19 = sadd.s32 1, %s15
    $region7: #{tpu_custom_call.1} parent=1 // loop_footer_branch
      %14 = sbr.rel target = $region3
    $region8: #{tpu_custom_call.1} parent=1 // loop_exit
      _
    %1623 = vsyncpa [#allocation3], 1
    %s1624 = scalar_lea.sflag [#allocation3], 1
    %1625 = vsyncpa %s1624, 1

</llo_original>
